<compile_context>
chip_gen: v7x
topology: tpu7x:2x2x1
jax: 0.10.0
libtpu: 0.0.40
codegen_flags: <defaults>
</compile_context>

<pallas_src>
import jax
import jax.numpy as jnp
from jax.experimental import pallas as pl
from jax.experimental.pallas import tpu as pltpu

_EPS = 1e-5


def _round_up(x, m):
    return ((x + m - 1) // m) * m


def mlp_class_head_kernel(x_ref,
                          w1, b1, g1, be1,
                          w2, b2, g2, be2,
                          w3, b3, g3, be3,
                          w4, b4, g4, be4,
                          w5, b5,
                          wh, bh,
                          out_ref):
    h = x_ref[...].astype(jnp.float32)
    # 4x (Linear -> LayerNorm -> ReLU); Python loop unrolls at trace time.
    for (w, b, g, be) in ((w1, b1, g1, be1),
                          (w2, b2, g2, be2),
                          (w3, b3, g3, be3),
                          (w4, b4, g4, be4)):
        # bf16 MXU inputs, f32 accumulation.
        h = jnp.dot(h.astype(jnp.bfloat16), w[...],
                    preferred_element_type=jnp.float32) + b[...]
        # LayerNorm (biased variance, eps=1e-5) entirely in f32, fused affine.
        mu = jnp.mean(h, axis=-1, keepdims=True)
        c = h - mu
        var = jnp.mean(c * c, axis=-1, keepdims=True)
        scale = g[...] * jax.lax.rsqrt(var + _EPS)          # rsqrt -> EUP
        h = jnp.maximum(c * scale + be[...], 0.0)           # fused affine + ReLU
    # Final MLPRegressor Linear (no norm / activation).
    h = jnp.dot(h.astype(jnp.bfloat16), w5[...],
                preferred_element_type=jnp.float32) + b5[...]
    # Classification head Linear(embed_dim, DICTSIZE).
    out_ref[...] = jnp.dot(h.astype(jnp.bfloat16), wh[...],
                           preferred_element_type=jnp.float32) + bh[...]


def init_params(key, input_dim, embed_dim, dictsize):
    """Deterministic synthetic params mirroring the PyTorch module's shapes.

    Weights are stored in bf16 (MXU-friendly); biases / LayerNorm affine in f32.
    """
    dims = [input_dim, input_dim * 4, input_dim * 8,
            embed_dim * 8, embed_dim * 4, embed_dim, dictsize]
    params = []
    for i in range(6):  # 5 MLPRegressor linears + 1 head linear
        d_in, d_out = dims[i], dims[i + 1]
        key, kw, kb = jax.random.split(key, 3)
        bound = 1.0 / (d_in ** 0.5)  # PyTorch nn.Linear default init range
        w = jax.random.uniform(kw, (d_in, d_out), jnp.float32, -bound, bound)
        b = jax.random.uniform(kb, (1, d_out), jnp.float32, -bound, bound)
        entry = {"w": w.astype(jnp.bfloat16), "b": b}
        if i < 4:  # first four layers are followed by LayerNorm (gamma=1, beta=0)
            entry["gamma"] = jnp.ones((1, d_out), jnp.float32)
            entry["beta"] = jnp.zeros((1, d_out), jnp.float32)
        params.append(entry)
    return params


def mlp_class_head(x, params, *, block_batch=256):
    batch, input_dim = x.shape
    dictsize = params[5]["w"].shape[1]

    # Batch tile: MXU-filling (>=256 rows) for real batches; tiny batches collapse
    # to a single padded tile.  Multiple of 16 -> bf16 sublane packing.
    tb = min(block_batch, _round_up(batch, 16))
    padded = _round_up(batch, tb)
    if padded != batch:
        x = jnp.pad(x, ((0, padded - batch), (0, 0)))
    grid = (padded // tb,)

    flat_args = [x]
    for i in range(4):
        p = params[i]
        flat_args += [p["w"], p["b"], p["gamma"], p["beta"]]
    flat_args += [params[4]["w"], params[4]["b"]]
    flat_args += [params[5]["w"], params[5]["b"]]

    def resident_spec(a):
        # Whole-array block, constant index_map -> DMA'd once, stays resident in
        # VMEM across all batch-grid steps (all params are 2-D).
        return pl.BlockSpec(a.shape, lambda i: (0, 0))

    in_specs = [pl.BlockSpec((tb, input_dim), lambda i: (i, 0))]
    in_specs += [resident_spec(a) for a in flat_args[1:]]
    out_spec = pl.BlockSpec((tb, dictsize), lambda i: (i, 0))  # lane-dense last dim

    # Cost estimate: 6 matmuls, 4 rsqrt per row, weight/activation traffic.
    weights = [params[i]["w"] for i in range(6)]
    flops = 2 * padded * sum(w.shape[0] * w.shape[1] for w in weights)
    bytes_accessed = int(sum(a.size * a.dtype.itemsize for a in flat_args)
                         + padded * dictsize * 4)
    cost = pl.CostEstimate(flops=flops,
                           transcendentals=4 * padded,
                           bytes_accessed=bytes_accessed)

    # Explicit VMEM budget: resident params + double-buffered x/out tiles +
    # headroom for a few live f32 activations at the widest hidden layer.
    param_bytes = sum(a.size * a.dtype.itemsize for a in flat_args[1:])
    io_bytes = 2 * (tb * input_dim * x.dtype.itemsize + tb * dictsize * 4)
    widest = max(w.shape[1] for w in weights)
    act_bytes = 4 * tb * widest * 4
    vmem_limit = min(max(int((param_bytes + io_bytes + act_bytes) * 1.5),
                         32 * 1024 * 1024),
                     64 * 1024 * 1024)  # stay within v7x physical VMEM

    out = pl.pallas_call(
        mlp_class_head_kernel,
        out_shape=jax.ShapeDtypeStruct((padded, dictsize), jnp.float32),
        grid=grid,
        in_specs=in_specs,
        out_specs=out_spec,
        compiler_params=pltpu.CompilerParams(
            dimension_semantics=("parallel",),
            vmem_limit_bytes=vmem_limit),
        cost_estimate=cost,
    )(*flat_args)
    return out[:batch]


def reference_forward(x, params):
    """Pure-JAX reference of the same forward pass (same bf16 quantization)."""
    h = x.astype(jnp.float32)
    for i in range(4):
        p = params[i]
        h = jnp.dot(h.astype(jnp.bfloat16), p["w"],
                    preferred_element_type=jnp.float32) + p["b"]
        mu = jnp.mean(h, axis=-1, keepdims=True)
        var = jnp.mean(jnp.square(h - mu), axis=-1, keepdims=True)
        h = (h - mu) * jax.lax.rsqrt(var + _EPS) * p["gamma"] + p["beta"]
        h = jnp.maximum(h, 0.0)
    h = jnp.dot(h.astype(jnp.bfloat16), params[4]["w"],
                preferred_element_type=jnp.float32) + params[4]["b"]
    return jnp.dot(h.astype(jnp.bfloat16), params[5]["w"],
                   preferred_element_type=jnp.float32) + params[5]["b"]


if __name__ == "__main__":
    input_dim, embed_dim, dictsize, batch = 32, 16, 128, 8

    key = jax.random.PRNGKey(0)
    kx, kp = jax.random.split(key)
    params = init_params(kp, input_dim, embed_dim, dictsize)
    x = jax.random.normal(kx, (batch, input_dim), jnp.float32)

    out = mlp_class_head(x, params)
    jax.block_until_ready(out)

    ref = reference_forward(x, params)
    assert out.shape == (batch, dictsize), out.shape
    err = float(jnp.max(jnp.abs(out - ref)))
    assert jnp.allclose(out, ref, atol=2e-2, rtol=2e-2), err

    print("KERNEL_OK")
</pallas_src>

<mosaic_0001>
module attributes {stable_mosaic.version = 11 : i64} {
  func.func @mlp_class_head_kernel(%arg0: i32, %arg1: memref<16x32xf32, #tpu.memory_space<vmem>>, %arg2: memref<32x128xbf16, #tpu.memory_space<vmem>>, %arg3: memref<1x128xf32, #tpu.memory_space<vmem>>, %arg4: memref<1x128xf32, #tpu.memory_space<vmem>>, %arg5: memref<1x128xf32, #tpu.memory_space<vmem>>, %arg6: memref<128x256xbf16, #tpu.memory_space<vmem>>, %arg7: memref<1x256xf32, #tpu.memory_space<vmem>>, %arg8: memref<1x256xf32, #tpu.memory_space<vmem>>, %arg9: memref<1x256xf32, #tpu.memory_space<vmem>>, %arg10: memref<256x128xbf16, #tpu.memory_space<vmem>>, %arg11: memref<1x128xf32, #tpu.memory_space<vmem>>, %arg12: memref<1x128xf32, #tpu.memory_space<vmem>>, %arg13: memref<1x128xf32, #tpu.memory_space<vmem>>, %arg14: memref<128x64xbf16, #tpu.memory_space<vmem>>, %arg15: memref<1x64xf32, #tpu.memory_space<vmem>>, %arg16: memref<1x64xf32, #tpu.memory_space<vmem>>, %arg17: memref<1x64xf32, #tpu.memory_space<vmem>>, %arg18: memref<64x16xbf16, #tpu.memory_space<vmem>>, %arg19: memref<1x16xf32, #tpu.memory_space<vmem>>, %arg20: memref<16x128xbf16, #tpu.memory_space<vmem>>, %arg21: memref<1x128xf32, #tpu.memory_space<vmem>>, %arg22: memref<16x128xf32, #tpu.memory_space<vmem>>) attributes {dimension_semantics = [#tpu.dimension_semantics<parallel>], iteration_bounds = array<i64: 1>, scalar_prefetch = 0 : i64, scratch_operands = 0 : i64, tpu.core_type = #tpu.core_type<tc>, window_params = [{transform_indices = @transform_0, window_bounds = array<i64: 16, 32>}, {pipeline_mode = #tpu.pipeline_mode<synchronous>, transform_indices = @transform_1, window_bounds = array<i64: 32, 128>}, {pipeline_mode = #tpu.pipeline_mode<synchronous>, transform_indices = @transform_2, window_bounds = array<i64: 1, 128>}, {pipeline_mode = #tpu.pipeline_mode<synchronous>, transform_indices = @transform_3, window_bounds = array<i64: 1, 128>}, {pipeline_mode = #tpu.pipeline_mode<synchronous>, transform_indices = @transform_4, window_bounds = array<i64: 1, 128>}, {pipeline_mode = #tpu.pipeline_mode<synchronous>, transform_indices = @transform_5, window_bounds = array<i64: 128, 256>}, {pipeline_mode = #tpu.pipeline_mode<synchronous>, transform_indices = @transform_6, window_bounds = array<i64: 1, 256>}, {pipeline_mode = #tpu.pipeline_mode<synchronous>, transform_indices = @transform_7, window_bounds = array<i64: 1, 256>}, {pipeline_mode = #tpu.pipeline_mode<synchronous>, transform_indices = @transform_8, window_bounds = array<i64: 1, 256>}, {pipeline_mode = #tpu.pipeline_mode<synchronous>, transform_indices = @transform_9, window_bounds = array<i64: 256, 128>}, {pipeline_mode = #tpu.pipeline_mode<synchronous>, transform_indices = @transform_10, window_bounds = array<i64: 1, 128>}, {pipeline_mode = #tpu.pipeline_mode<synchronous>, transform_indices = @transform_11, window_bounds = array<i64: 1, 128>}, {pipeline_mode = #tpu.pipeline_mode<synchronous>, transform_indices = @transform_12, window_bounds = array<i64: 1, 128>}, {pipeline_mode = #tpu.pipeline_mode<synchronous>, transform_indices = @transform_13, window_bounds = array<i64: 128, 64>}, {pipeline_mode = #tpu.pipeline_mode<synchronous>, transform_indices = @transform_14, window_bounds = array<i64: 1, 64>}, {pipeline_mode = #tpu.pipeline_mode<synchronous>, transform_indices = @transform_15, window_bounds = array<i64: 1, 64>}, {pipeline_mode = #tpu.pipeline_mode<synchronous>, transform_indices = @transform_16, window_bounds = array<i64: 1, 64>}, {pipeline_mode = #tpu.pipeline_mode<synchronous>, transform_indices = @transform_17, window_bounds = array<i64: 64, 16>}, {pipeline_mode = #tpu.pipeline_mode<synchronous>, transform_indices = @transform_18, window_bounds = array<i64: 1, 16>}, {pipeline_mode = #tpu.pipeline_mode<synchronous>, transform_indices = @transform_19, window_bounds = array<i64: 16, 128>}, {pipeline_mode = #tpu.pipeline_mode<synchronous>, transform_indices = @transform_20, window_bounds = array<i64: 1, 128>}, {transform_indices = @transform_21, window_bounds = array<i64: 16, 128>}]} {
    %c0 = arith.constant 0 : index
    %c0_0 = arith.constant 0 : index
    %0 = vector.load %arg1[%c0, %c0_0] : memref<16x32xf32, #tpu.memory_space<vmem>>, vector<16x32xf32>
    %1 = arith.truncf %0 : vector<16x32xf32> to vector<16x32xbf16>
    %c0_1 = arith.constant 0 : index
    %c0_2 = arith.constant 0 : index
    %2 = vector.load %arg2[%c0_1, %c0_2] : memref<32x128xbf16, #tpu.memory_space<vmem>>, vector<32x128xbf16>
    %cst = arith.constant dense<0.000000e+00> : vector<16x128xf32>
    %3 = tpu.matmul %1, %2, %cst {dimension_numbers = #tpu.dot_dimension_numbers<[1], [0], [0], [1], [0, 0, 1, 1], [], []>} : vector<16x32xbf16>, vector<32x128xbf16>, vector<16x128xf32> -> vector<16x128xf32>
    %c0_3 = arith.constant 0 : index
    %c0_4 = arith.constant 0 : index
    %4 = vector.load %arg3[%c0_3, %c0_4] : memref<1x128xf32, #tpu.memory_space<vmem>>, vector<1x128xf32>
    %5 = vector.broadcast %4 : vector<1x128xf32> to vector<16x128xf32>
    %6 = arith.addf %3, %5 : vector<16x128xf32>
    %cst_5 = arith.constant dense<0.000000e+00> : vector<16xf32>
    %7 = vector.multi_reduction <add>, %6, %cst_5 [1] : vector<16x128xf32> to vector<16xf32>
    %8 = vector.shape_cast %7 : vector<16xf32> to vector<16x1xf32>
    %cst_6 = arith.constant 1.280000e+02 : f32
    %9 = vector.broadcast %cst_6 : f32 to vector<16x1xf32>
    %10 = arith.divf %8, %9 : vector<16x1xf32>
    %11 = vector.broadcast %10 : vector<16x1xf32> to vector<16x128xf32>
    %12 = arith.subf %6, %11 : vector<16x128xf32>
    %13 = arith.mulf %12, %12 : vector<16x128xf32>
    %cst_7 = arith.constant dense<0.000000e+00> : vector<16xf32>
    %14 = vector.multi_reduction <add>, %13, %cst_7 [1] : vector<16x128xf32> to vector<16xf32>
    %15 = vector.shape_cast %14 : vector<16xf32> to vector<16x1xf32>
    %cst_8 = arith.constant 1.280000e+02 : f32
    %16 = vector.broadcast %cst_8 : f32 to vector<16x1xf32>
    %17 = arith.divf %15, %16 : vector<16x1xf32>
    %c0_9 = arith.constant 0 : index
    %c0_10 = arith.constant 0 : index
    %18 = vector.load %arg4[%c0_9, %c0_10] : memref<1x128xf32, #tpu.memory_space<vmem>>, vector<1x128xf32>
    %cst_11 = arith.constant 9.99999974E-6 : f32
    %19 = vector.broadcast %cst_11 : f32 to vector<16x1xf32>
    %20 = arith.addf %17, %19 : vector<16x1xf32>
    %21 = math.rsqrt %20 : vector<16x1xf32>
    %22 = vector.broadcast %18 : vector<1x128xf32> to vector<16x128xf32>
    %23 = vector.broadcast %21 : vector<16x1xf32> to vector<16x128xf32>
    %24 = arith.mulf %22, %23 : vector<16x128xf32>
    %25 = arith.mulf %12, %24 : vector<16x128xf32>
    %c0_12 = arith.constant 0 : index
    %c0_13 = arith.constant 0 : index
    %26 = vector.load %arg5[%c0_12, %c0_13] : memref<1x128xf32, #tpu.memory_space<vmem>>, vector<1x128xf32>
    %27 = vector.broadcast %26 : vector<1x128xf32> to vector<16x128xf32>
    %28 = arith.addf %25, %27 : vector<16x128xf32>
    %cst_14 = arith.constant 0.000000e+00 : f32
    %29 = vector.broadcast %cst_14 : f32 to vector<16x128xf32>
    %30 = arith.maximumf %28, %29 : vector<16x128xf32>
    %31 = arith.truncf %30 : vector<16x128xf32> to vector<16x128xbf16>
    %c0_15 = arith.constant 0 : index
    %c0_16 = arith.constant 0 : index
    %32 = vector.load %arg6[%c0_15, %c0_16] : memref<128x256xbf16, #tpu.memory_space<vmem>>, vector<128x256xbf16>
    %cst_17 = arith.constant dense<0.000000e+00> : vector<16x256xf32>
    %33 = tpu.matmul %31, %32, %cst_17 {dimension_numbers = #tpu.dot_dimension_numbers<[1], [0], [0], [1], [0, 0, 1, 1], [], []>} : vector<16x128xbf16>, vector<128x256xbf16>, vector<16x256xf32> -> vector<16x256xf32>
    %c0_18 = arith.constant 0 : index
    %c0_19 = arith.constant 0 : index
    %34 = vector.load %arg7[%c0_18, %c0_19] : memref<1x256xf32, #tpu.memory_space<vmem>>, vector<1x256xf32>
    %35 = vector.broadcast %34 : vector<1x256xf32> to vector<16x256xf32>
    %36 = arith.addf %33, %35 : vector<16x256xf32>
    %cst_20 = arith.constant dense<0.000000e+00> : vector<16xf32>
    %37 = vector.multi_reduction <add>, %36, %cst_20 [1] : vector<16x256xf32> to vector<16xf32>
    %38 = vector.shape_cast %37 : vector<16xf32> to vector<16x1xf32>
    %cst_21 = arith.constant 2.560000e+02 : f32
    %39 = vector.broadcast %cst_21 : f32 to vector<16x1xf32>
    %40 = arith.divf %38, %39 : vector<16x1xf32>
    %41 = vector.broadcast %40 : vector<16x1xf32> to vector<16x256xf32>
    %42 = arith.subf %36, %41 : vector<16x256xf32>
    %43 = arith.mulf %42, %42 : vector<16x256xf32>
    %cst_22 = arith.constant dense<0.000000e+00> : vector<16xf32>
    %44 = vector.multi_reduction <add>, %43, %cst_22 [1] : vector<16x256xf32> to vector<16xf32>
    %45 = vector.shape_cast %44 : vector<16xf32> to vector<16x1xf32>
    %cst_23 = arith.constant 2.560000e+02 : f32
    %46 = vector.broadcast %cst_23 : f32 to vector<16x1xf32>
    %47 = arith.divf %45, %46 : vector<16x1xf32>
    %c0_24 = arith.constant 0 : index
    %c0_25 = arith.constant 0 : index
    %48 = vector.load %arg8[%c0_24, %c0_25] : memref<1x256xf32, #tpu.memory_space<vmem>>, vector<1x256xf32>
    %cst_26 = arith.constant 9.99999974E-6 : f32
    %49 = vector.broadcast %cst_26 : f32 to vector<16x1xf32>
    %50 = arith.addf %47, %49 : vector<16x1xf32>
    %51 = math.rsqrt %50 : vector<16x1xf32>
    %52 = vector.broadcast %48 : vector<1x256xf32> to vector<16x256xf32>
    %53 = vector.broadcast %51 : vector<16x1xf32> to vector<16x256xf32>
    %54 = arith.mulf %52, %53 : vector<16x256xf32>
    %55 = arith.mulf %42, %54 : vector<16x256xf32>
    %c0_27 = arith.constant 0 : index
    %c0_28 = arith.constant 0 : index
    %56 = vector.load %arg9[%c0_27, %c0_28] : memref<1x256xf32, #tpu.memory_space<vmem>>, vector<1x256xf32>
    %57 = vector.broadcast %56 : vector<1x256xf32> to vector<16x256xf32>
    %58 = arith.addf %55, %57 : vector<16x256xf32>
    %cst_29 = arith.constant 0.000000e+00 : f32
    %59 = vector.broadcast %cst_29 : f32 to vector<16x256xf32>
    %60 = arith.maximumf %58, %59 : vector<16x256xf32>
    %61 = arith.truncf %60 : vector<16x256xf32> to vector<16x256xbf16>
    %c0_30 = arith.constant 0 : index
    %c0_31 = arith.constant 0 : index
    %62 = vector.load %arg10[%c0_30, %c0_31] : memref<256x128xbf16, #tpu.memory_space<vmem>>, vector<256x128xbf16>
    %cst_32 = arith.constant dense<0.000000e+00> : vector<16x128xf32>
    %63 = tpu.matmul %61, %62, %cst_32 {dimension_numbers = #tpu.dot_dimension_numbers<[1], [0], [0], [1], [0, 0, 1, 1], [], []>} : vector<16x256xbf16>, vector<256x128xbf16>, vector<16x128xf32> -> vector<16x128xf32>
    %c0_33 = arith.constant 0 : index
    %c0_34 = arith.constant 0 : index
    %64 = vector.load %arg11[%c0_33, %c0_34] : memref<1x128xf32, #tpu.memory_space<vmem>>, vector<1x128xf32>
    %65 = vector.broadcast %64 : vector<1x128xf32> to vector<16x128xf32>
    %66 = arith.addf %63, %65 : vector<16x128xf32>
    %cst_35 = arith.constant dense<0.000000e+00> : vector<16xf32>
    %67 = vector.multi_reduction <add>, %66, %cst_35 [1] : vector<16x128xf32> to vector<16xf32>
    %68 = vector.shape_cast %67 : vector<16xf32> to vector<16x1xf32>
    %cst_36 = arith.constant 1.280000e+02 : f32
    %69 = vector.broadcast %cst_36 : f32 to vector<16x1xf32>
    %70 = arith.divf %68, %69 : vector<16x1xf32>
    %71 = vector.broadcast %70 : vector<16x1xf32> to vector<16x128xf32>
    %72 = arith.subf %66, %71 : vector<16x128xf32>
    %73 = arith.mulf %72, %72 : vector<16x128xf32>
    %cst_37 = arith.constant dense<0.000000e+00> : vector<16xf32>
    %74 = vector.multi_reduction <add>, %73, %cst_37 [1] : vector<16x128xf32> to vector<16xf32>
    %75 = vector.shape_cast %74 : vector<16xf32> to vector<16x1xf32>
    %cst_38 = arith.constant 1.280000e+02 : f32
    %76 = vector.broadcast %cst_38 : f32 to vector<16x1xf32>
    %77 = arith.divf %75, %76 : vector<16x1xf32>
    %c0_39 = arith.constant 0 : index
    %c0_40 = arith.constant 0 : index
    %78 = vector.load %arg12[%c0_39, %c0_40] : memref<1x128xf32, #tpu.memory_space<vmem>>, vector<1x128xf32>
    %cst_41 = arith.constant 9.99999974E-6 : f32
    %79 = vector.broadcast %cst_41 : f32 to vector<16x1xf32>
    %80 = arith.addf %77, %79 : vector<16x1xf32>
    %81 = math.rsqrt %80 : vector<16x1xf32>
    %82 = vector.broadcast %78 : vector<1x128xf32> to vector<16x128xf32>
    %83 = vector.broadcast %81 : vector<16x1xf32> to vector<16x128xf32>
    %84 = arith.mulf %82, %83 : vector<16x128xf32>
    %85 = arith.mulf %72, %84 : vector<16x128xf32>
    %c0_42 = arith.constant 0 : index
    %c0_43 = arith.constant 0 : index
    %86 = vector.load %arg13[%c0_42, %c0_43] : memref<1x128xf32, #tpu.memory_space<vmem>>, vector<1x128xf32>
    %87 = vector.broadcast %86 : vector<1x128xf32> to vector<16x128xf32>
    %88 = arith.addf %85, %87 : vector<16x128xf32>
    %cst_44 = arith.constant 0.000000e+00 : f32
    %89 = vector.broadcast %cst_44 : f32 to vector<16x128xf32>
    %90 = arith.maximumf %88, %89 : vector<16x128xf32>
    %91 = arith.truncf %90 : vector<16x128xf32> to vector<16x128xbf16>
    %c0_45 = arith.constant 0 : index
    %c0_46 = arith.constant 0 : index
    %92 = vector.load %arg14[%c0_45, %c0_46] : memref<128x64xbf16, #tpu.memory_space<vmem>>, vector<128x64xbf16>
    %cst_47 = arith.constant dense<0.000000e+00> : vector<16x64xf32>
    %93 = tpu.matmul %91, %92, %cst_47 {dimension_numbers = #tpu.dot_dimension_numbers<[1], [0], [0], [1], [0, 0, 1, 1], [], []>} : vector<16x128xbf16>, vector<128x64xbf16>, vector<16x64xf32> -> vector<16x64xf32>
    %c0_48 = arith.constant 0 : index
    %c0_49 = arith.constant 0 : index
    %94 = vector.load %arg15[%c0_48, %c0_49] : memref<1x64xf32, #tpu.memory_space<vmem>>, vector<1x64xf32>
    %95 = vector.broadcast %94 : vector<1x64xf32> to vector<16x64xf32>
    %96 = arith.addf %93, %95 : vector<16x64xf32>
    %cst_50 = arith.constant dense<0.000000e+00> : vector<16xf32>
    %97 = vector.multi_reduction <add>, %96, %cst_50 [1] : vector<16x64xf32> to vector<16xf32>
    %98 = vector.shape_cast %97 : vector<16xf32> to vector<16x1xf32>
    %cst_51 = arith.constant 6.400000e+01 : f32
    %99 = vector.broadcast %cst_51 : f32 to vector<16x1xf32>
    %100 = arith.divf %98, %99 : vector<16x1xf32>
    %101 = vector.broadcast %100 : vector<16x1xf32> to vector<16x64xf32>
    %102 = arith.subf %96, %101 : vector<16x64xf32>
    %103 = arith.mulf %102, %102 : vector<16x64xf32>
    %cst_52 = arith.constant dense<0.000000e+00> : vector<16xf32>
    %104 = vector.multi_reduction <add>, %103, %cst_52 [1] : vector<16x64xf32> to vector<16xf32>
    %105 = vector.shape_cast %104 : vector<16xf32> to vector<16x1xf32>
    %cst_53 = arith.constant 6.400000e+01 : f32
    %106 = vector.broadcast %cst_53 : f32 to vector<16x1xf32>
    %107 = arith.divf %105, %106 : vector<16x1xf32>
    %c0_54 = arith.constant 0 : index
    %c0_55 = arith.constant 0 : index
    %108 = vector.load %arg16[%c0_54, %c0_55] : memref<1x64xf32, #tpu.memory_space<vmem>>, vector<1x64xf32>
    %cst_56 = arith.constant 9.99999974E-6 : f32
    %109 = vector.broadcast %cst_56 : f32 to vector<16x1xf32>
    %110 = arith.addf %107, %109 : vector<16x1xf32>
    %111 = math.rsqrt %110 : vector<16x1xf32>
    %112 = vector.broadcast %108 : vector<1x64xf32> to vector<16x64xf32>
    %113 = vector.broadcast %111 : vector<16x1xf32> to vector<16x64xf32>
    %114 = arith.mulf %112, %113 : vector<16x64xf32>
    %115 = arith.mulf %102, %114 : vector<16x64xf32>
    %c0_57 = arith.constant 0 : index
    %c0_58 = arith.constant 0 : index
    %116 = vector.load %arg17[%c0_57, %c0_58] : memref<1x64xf32, #tpu.memory_space<vmem>>, vector<1x64xf32>
    %117 = vector.broadcast %116 : vector<1x64xf32> to vector<16x64xf32>
    %118 = arith.addf %115, %117 : vector<16x64xf32>
    %cst_59 = arith.constant 0.000000e+00 : f32
    %119 = vector.broadcast %cst_59 : f32 to vector<16x64xf32>
    %120 = arith.maximumf %118, %119 : vector<16x64xf32>
    %121 = arith.truncf %120 : vector<16x64xf32> to vector<16x64xbf16>
    %c0_60 = arith.constant 0 : index
    %c0_61 = arith.constant 0 : index
    %122 = vector.load %arg18[%c0_60, %c0_61] : memref<64x16xbf16, #tpu.memory_space<vmem>>, vector<64x16xbf16>
    %cst_62 = arith.constant dense<0.000000e+00> : vector<16x16xf32>
    %123 = tpu.matmul %121, %122, %cst_62 {dimension_numbers = #tpu.dot_dimension_numbers<[1], [0], [0], [1], [0, 0, 1, 1], [], []>} : vector<16x64xbf16>, vector<64x16xbf16>, vector<16x16xf32> -> vector<16x16xf32>
    %c0_63 = arith.constant 0 : index
    %c0_64 = arith.constant 0 : index
    %124 = vector.load %arg19[%c0_63, %c0_64] : memref<1x16xf32, #tpu.memory_space<vmem>>, vector<1x16xf32>
    %125 = vector.broadcast %124 : vector<1x16xf32> to vector<16x16xf32>
    %126 = arith.addf %123, %125 : vector<16x16xf32>
    %127 = arith.truncf %126 : vector<16x16xf32> to vector<16x16xbf16>
    %c0_65 = arith.constant 0 : index
    %c0_66 = arith.constant 0 : index
    %128 = vector.load %arg20[%c0_65, %c0_66] : memref<16x128xbf16, #tpu.memory_space<vmem>>, vector<16x128xbf16>
    %cst_67 = arith.constant dense<0.000000e+00> : vector<16x128xf32>
    %129 = tpu.matmul %127, %128, %cst_67 {dimension_numbers = #tpu.dot_dimension_numbers<[1], [0], [0], [1], [0, 0, 1, 1], [], []>} : vector<16x16xbf16>, vector<16x128xbf16>, vector<16x128xf32> -> vector<16x128xf32>
    %c0_68 = arith.constant 0 : index
    %c0_69 = arith.constant 0 : index
    %130 = vector.load %arg21[%c0_68, %c0_69] : memref<1x128xf32, #tpu.memory_space<vmem>>, vector<1x128xf32>
    %131 = vector.broadcast %130 : vector<1x128xf32> to vector<16x128xf32>
    %132 = arith.addf %129, %131 : vector<16x128xf32>
    %c0_70 = arith.constant 0 : index
    %c0_71 = arith.constant 0 : index
    %133 = vector.load %arg22[%c0_70, %c0_71] : memref<16x128xf32, #tpu.memory_space<vmem>>, vector<16x128xf32>
    tpu.vector_store %arg22[%c0_70, %c0_71], %132 {strides = array<i32>} : memref<16x128xf32, #tpu.memory_space<vmem>>, vector<16x128xf32>,
    return
  }
  func.func @transform_0(%arg0: i32) -> (i32, i32) {
    %c0_i32 = arith.constant 0 : i32
    %c0_i32_0 = arith.constant 0 : i32
    return %arg0, %c0_i32 : i32, i32
  }
  func.func @transform_1(%arg0: i32) -> (i32, i32) {
    %c0_i32 = arith.constant 0 : i32
    %c0_i32_0 = arith.constant 0 : i32
    %c0_i32_1 = arith.constant 0 : i32
    return %c0_i32, %c0_i32_0 : i32, i32
  }
  func.func @transform_2(%arg0: i32) -> (i32, i32) {
    %c0_i32 = arith.constant 0 : i32
    %c0_i32_0 = arith.constant 0 : i32
    %c0_i32_1 = arith.constant 0 : i32
    return %c0_i32, %c0_i32_0 : i32, i32
  }
  func.func @transform_3(%arg0: i32) -> (i32, i32) {
    %c0_i32 = arith.constant 0 : i32
    %c0_i32_0 = arith.constant 0 : i32
    %c0_i32_1 = arith.constant 0 : i32
    return %c0_i32, %c0_i32_0 : i32, i32
  }
  func.func @transform_4(%arg0: i32) -> (i32, i32) {
    %c0_i32 = arith.constant 0 : i32
    %c0_i32_0 = arith.constant 0 : i32
    %c0_i32_1 = arith.constant 0 : i32
    return %c0_i32, %c0_i32_0 : i32, i32
  }
  func.func @transform_5(%arg0: i32) -> (i32, i32) {
    %c0_i32 = arith.constant 0 : i32
    %c0_i32_0 = arith.constant 0 : i32
    %c0_i32_1 = arith.constant 0 : i32
    return %c0_i32, %c0_i32_0 : i32, i32
  }
  func.func @transform_6(%arg0: i32) -> (i32, i32) {
    %c0_i32 = arith.constant 0 : i32
    %c0_i32_0 = arith.constant 0 : i32
    %c0_i32_1 = arith.constant 0 : i32
    return %c0_i32, %c0_i32_0 : i32, i32
  }
  func.func @transform_7(%arg0: i32) -> (i32, i32) {
    %c0_i32 = arith.constant 0 : i32
    %c0_i32_0 = arith.constant 0 : i32
    %c0_i32_1 = arith.constant 0 : i32
    return %c0_i32, %c0_i32_0 : i32, i32
  }
  func.func @transform_8(%arg0: i32) -> (i32, i32) {
    %c0_i32 = arith.constant 0 : i32
    %c0_i32_0 = arith.constant 0 : i32
    %c0_i32_1 = arith.constant 0 : i32
    return %c0_i32, %c0_i32_0 : i32, i32
  }
  func.func @transform_9(%arg0: i32) -> (i32, i32) {
    %c0_i32 = arith.constant 0 : i32
    %c0_i32_0 = arith.constant 0 : i32
    %c0_i32_1 = arith.constant 0 : i32
    return %c0_i32, %c0_i32_0 : i32, i32
  }
  func.func @transform_10(%arg0: i32) -> (i32, i32) {
    %c0_i32 = arith.constant 0 : i32
    %c0_i32_0 = arith.constant 0 : i32
    %c0_i32_1 = arith.constant 0 : i32
    return %c0_i32, %c0_i32_0 : i32, i32
  }
  func.func @transform_11(%arg0: i32) -> (i32, i32) {
    %c0_i32 = arith.constant 0 : i32
    %c0_i32_0 = arith.constant 0 : i32
    %c0_i32_1 = arith.constant 0 : i32
    return %c0_i32, %c0_i32_0 : i32, i32
  }
  func.func @transform_12(%arg0: i32) -> (i32, i32) {
    %c0_i32 = arith.constant 0 : i32
    %c0_i32_0 = arith.constant 0 : i32
    %c0_i32_1 = arith.constant 0 : i32
    return %c0_i32, %c0_i32_0 : i32, i32
  }
  func.func @transform_13(%arg0: i32) -> (i32, i32) {
    %c0_i32 = arith.constant 0 : i32
    %c0_i32_0 = arith.constant 0 : i32
    %c0_i32_1 = arith.constant 0 : i32
    return %c0_i32, %c0_i32_0 : i32, i32
  }
  func.func @transform_14(%arg0: i32) -> (i32, i32) {
    %c0_i32 = arith.constant 0 : i32
    %c0_i32_0 = arith.constant 0 : i32
    %c0_i32_1 = arith.constant 0 : i32
    return %c0_i32, %c0_i32_0 : i32, i32
  }
  func.func @transform_15(%arg0: i32) -> (i32, i32) {
    %c0_i32 = arith.constant 0 : i32
    %c0_i32_0 = arith.constant 0 : i32
    %c0_i32_1 = arith.constant 0 : i32
    return %c0_i32, %c0_i32_0 : i32, i32
  }
  func.func @transform_16(%arg0: i32) -> (i32, i32) {
    %c0_i32 = arith.constant 0 : i32
    %c0_i32_0 = arith.constant 0 : i32
    %c0_i32_1 = arith.constant 0 : i32
    return %c0_i32, %c0_i32_0 : i32, i32
  }
  func.func @transform_17(%arg0: i32) -> (i32, i32) {
    %c0_i32 = arith.constant 0 : i32
    %c0_i32_0 = arith.constant 0 : i32
    %c0_i32_1 = arith.constant 0 : i32
    return %c0_i32, %c0_i32_0 : i32, i32
  }
  func.func @transform_18(%arg0: i32) -> (i32, i32) {
    %c0_i32 = arith.constant 0 : i32
    %c0_i32_0 = arith.constant 0 : i32
    %c0_i32_1 = arith.constant 0 : i32
    return %c0_i32, %c0_i32_0 : i32, i32
  }
  func.func @transform_19(%arg0: i32) -> (i32, i32) {
    %c0_i32 = arith.constant 0 : i32
    %c0_i32_0 = arith.constant 0 : i32
    %c0_i32_1 = arith.constant 0 : i32
    return %c0_i32, %c0_i32_0 : i32, i32
  }
  func.func @transform_20(%arg0: i32) -> (i32, i32) {
    %c0_i32 = arith.constant 0 : i32
    %c0_i32_0 = arith.constant 0 : i32
    %c0_i32_1 = arith.constant 0 : i32
    return %c0_i32, %c0_i32_0 : i32, i32
  }
  func.func @transform_21(%arg0: i32) -> (i32, i32) {
    %c0_i32 = arith.constant 0 : i32
    %c0_i32_0 = arith.constant 0 : i32
    return %arg0, %c0_i32 : i32, i32
  }
}

</mosaic_0001>

<llo_original>
// kernel: tpu_custom_call.1
$region0: #{tpu_custom_call.1}
  #allocation0 [shape = 'u32[]', space=smem, size = 0x4, offset = 0x4, fixed_abs, tag = 'smem constant byte address 0x4 - core index']
  #allocation1 [shape = 'u32[144,128]{1,0:T(1,128)}', space=vmem, size = 0x12000, scoped, tag = 'internal scratch']
  %s0 = inlined_call_operand.hbm [shape: f32[16,32], index: 0, kind: input, shape index: {}]
  %s1 = inlined_call_operand.hbm [shape: bf16[32,128], index: 1, kind: input, shape index: {}]
  %s2 = inlined_call_operand.vmem [shape: f32[1,128], index: 2, kind: input, shape index: {}]
  %s3 = inlined_call_operand.hbm [shape: f32[1,128], index: 3, kind: input, shape index: {}]
  %s4 = inlined_call_operand.hbm [shape: f32[1,128], index: 4, kind: input, shape index: {}]
  %s5 = inlined_call_operand.vmem [shape: bf16[128,256], index: 5, kind: input, shape index: {}]
  %s6 = inlined_call_operand.hbm [shape: f32[1,256], index: 6, kind: input, shape index: {}]
  %s7 = inlined_call_operand.hbm [shape: f32[1,256], index: 7, kind: input, shape index: {}]
  %s8 = inlined_call_operand.hbm [shape: f32[1,256], index: 8, kind: input, shape index: {}]
  %s9 = inlined_call_operand.hbm [shape: bf16[256,128], index: 9, kind: input, shape index: {}]
  %s10 = inlined_call_operand.hbm [shape: f32[1,128], index: 10, kind: input, shape index: {}]
  %s11 = inlined_call_operand.hbm [shape: f32[1,128], index: 11, kind: input, shape index: {}]
  %s12 = inlined_call_operand.vmem [shape: f32[1,128], index: 12, kind: input, shape index: {}]
  %s13 = inlined_call_operand.vmem [shape: bf16[128,64], index: 13, kind: input, shape index: {}]
  %s14 = inlined_call_operand.vmem [shape: f32[1,64], index: 14, kind: input, shape index: {}]
  %s15 = inlined_call_operand.vmem [shape: f32[1,64], index: 15, kind: input, shape index: {}]
  %s16 = inlined_call_operand.vmem [shape: f32[1,64], index: 16, kind: input, shape index: {}]
  %s17 = inlined_call_operand.vmem [shape: bf16[64,16], index: 17, kind: input, shape index: {}]
  %s18 = inlined_call_operand.vmem [shape: f32[1,16], index: 18, kind: input, shape index: {}]
  %s19 = inlined_call_operand.vmem [shape: bf16[16,128], index: 19, kind: input, shape index: {}]
  %s20 = inlined_call_operand.vmem [shape: f32[1,128], index: 20, kind: input, shape index: {}]
  %s21 = inlined_call_operand.hbm [shape: f32[16,128], index: 21, kind: output, shape index: {}]
  %s22 = sld [smem:[#allocation0]]
  $region134: #{tpu_custom_call.1} parent=0
    _
  %s24 = ssub.s32 1, %s22
  %s25 = scalar_select 0, %s24, %s22
  $region1: #{tpu_custom_call.1} parent=0
    #allocation2 [shape = 'u8[8192]{0}', space=vmem, size = 0x2000, scoped, tag = 'input window, operand 0, single buffered']
    #allocation3 [shape = 's32[1]{0}', space=sflag, size = 0x4, scoped, tag = 'scoped memory for tpu_custom_call.1']
    #allocation4 [shape = 's32[1]{0}', space=sflag, size = 0x4, scoped, tag = 'scoped memory for tpu_custom_call.1']
    #allocation5 [shape = 'u8[8192]{0}', space=vmem, size = 0x2000, scoped, tag = 'input window, operand 1, single buffered']
    #allocation6 [shape = 's32[1]{0}', space=sflag, size = 0x4, scoped, tag = 'scoped memory for tpu_custom_call.1']
    #allocation7 [shape = 'u8[512]{0}', space=vmem, size = 0x400, scoped, tag = 'input window, operand 3, single buffered']
    #allocation8 [shape = 'u8[512]{0}', space=vmem, size = 0x400, scoped, tag = 'input window, operand 4, single buffered']
    #allocation9 [shape = 's32[1]{0}', space=sflag, size = 0x4, scoped, tag = 'scoped memory for tpu_custom_call.1']
    #allocation10 [shape = 'u8[1024]{0}', space=vmem, size = 0x400, scoped, tag = 'input window, operand 6, single buffered']
    #allocation11 [shape = 'u8[1024]{0}', space=vmem, size = 0x400, scoped, tag = 'input window, operand 7, single buffered']
    #allocation12 [shape = 's32[1]{0}', space=sflag, size = 0x4, scoped, tag = 'scoped memory for tpu_custom_call.1']
    #allocation13 [shape = 'u8[1024]{0}', space=vmem, size = 0x400, scoped, tag = 'input window, operand 8, single buffered']
    #allocation14 [shape = 'u8[65536]{0}', space=vmem, size = 0x10000, scoped, tag = 'input window, operand 9, single buffered']
    #allocation15 [shape = 's32[1]{0}', space=sflag, size = 0x4, scoped, tag = 'scoped memory for tpu_custom_call.1']
    #allocation16 [shape = 'u8[512]{0}', space=vmem, size = 0x400, scoped, tag = 'input window, operand 10, single buffered']
    #allocation17 [shape = 'u8[512]{0}', space=vmem, size = 0x400, scoped, tag = 'input window, operand 11, single buffered']
    #allocation18 [shape = 's32[1]{0}', space=sflag, size = 0x4, scoped, tag = 'scoped memory for tpu_custom_call.1']
    #allocation19 [shape = 'u8[8192]{0}', space=vmem, size = 0x2000, scoped, tag = 'output window, operand 0, single buffered']
    %26 = vsyncpa [#allocation3], 0
    %27 = vsyncpa [#allocation6], 0
    %28 = vsyncpa [#allocation9], 0
    %29 = vsyncpa [#allocation12], 0
    %30 = vsyncpa [#allocation15], 0
    %31 = vsyncpa [#allocation18], 0
    %32 = vsyncpa [#allocation4], 0
    // Predicated region
    $region2: #{tpu_custom_call.1} parent=1 // pred_check
      _
    $region3: #{tpu_custom_call.1} parent=1 // pred_check_branch
      %34 = sbr.rel (0) target = $region5
    $region4: #{tpu_custom_call.1} parent=1 // pred_region
      %s36 = ssub.s32 256, 256
      %37 = vsyncadd [#allocation3], %s36
      %s38 = sshll.u32 [#allocation2], 4
      %s39 = int_to_ptr.vmem [resolvable:$true] %s38
      %44 = dma.hbm_to_vmem [thread:$0]  %s0, 256, %s39, [#allocation3], 128, 128, 8
    $region5: #{tpu_custom_call.1} parent=1 // pred_fallthru
      _
    // Predicated region
    $region6: #{tpu_custom_call.1} parent=1 // pred_check
      _
    $region7: #{tpu_custom_call.1} parent=1 // pred_check_branch
      %46 = sbr.rel (0) target = $region9
    $region8: #{tpu_custom_call.1} parent=1 // pred_region
      %s48 = ssub.s32 256, 256
      %49 = vsyncadd [#allocation6], %s48
      %s50 = sshll.u32 [#allocation5], 4
      %s51 = int_to_ptr.vmem [resolvable:$true] %s50
      %56 = dma.hbm_to_vmem [thread:$0]  %s1, 256, %s51, [#allocation6], 64, 64, 4
    $region9: #{tpu_custom_call.1} parent=1 // pred_fallthru
      _
    // Predicated region
    $region10: #{tpu_custom_call.1} parent=1 // pred_check
      _
    $region11: #{tpu_custom_call.1} parent=1 // pred_check_branch
      %58 = sbr.rel (0) target = $region13
    $region12: #{tpu_custom_call.1} parent=1 // pred_region
      _
    $region13: #{tpu_custom_call.1} parent=1 // pred_fallthru
      _
    // Predicated region
    $region14: #{tpu_custom_call.1} parent=1 // pred_check
      _
    $region15: #{tpu_custom_call.1} parent=1 // pred_check_branch
      %60 = sbr.rel (0) target = $region17
    $region16: #{tpu_custom_call.1} parent=1 // pred_region
      %s62 = ssub.s32 16, 16
      %63 = vsyncadd [#allocation6], %s62
      %s65 = sshll.u32 [#allocation7], 4
      %s66 = int_to_ptr.vmem [resolvable:$true] %s65
      %68 = dma.hbm_to_vmem [thread:$0]  %s3, 16, %s66, [#allocation6]
    $region17: #{tpu_custom_call.1} parent=1 // pred_fallthru
      _
    // Predicated region
    $region18: #{tpu_custom_call.1} parent=1 // pred_check
      _
    $region19: #{tpu_custom_call.1} parent=1 // pred_check_branch
      %70 = sbr.rel (0) target = $region21
    $region20: #{tpu_custom_call.1} parent=1 // pred_region
      %s72 = ssub.s32 16, 16
      %73 = vsyncadd [#allocation9], %s72
      %s75 = sshll.u32 [#allocation8], 4
      %s76 = int_to_ptr.vmem [resolvable:$true] %s75
      %78 = dma.hbm_to_vmem [thread:$0]  %s4, 16, %s76, [#allocation9]
    $region21: #{tpu_custom_call.1} parent=1 // pred_fallthru
      _
    // Predicated region
    $region22: #{tpu_custom_call.1} parent=1 // pred_check
      _
    $region23: #{tpu_custom_call.1} parent=1 // pred_check_branch
      %80 = sbr.rel (0) target = $region25
    $region24: #{tpu_custom_call.1} parent=1 // pred_region
      _
    $region25: #{tpu_custom_call.1} parent=1 // pred_fallthru
      _
    // Predicated region
    $region26: #{tpu_custom_call.1} parent=1 // pred_check
      _
    $region27: #{tpu_custom_call.1} parent=1 // pred_check_branch
      %82 = sbr.rel (0) target = $region29
    $region28: #{tpu_custom_call.1} parent=1 // pred_region
      %s84 = ssub.s32 32, 32
      %85 = vsyncadd [#allocation9], %s84
      %s87 = sshll.u32 [#allocation10], 4
      %s88 = int_to_ptr.vmem [resolvable:$true] %s87
      %90 = dma.hbm_to_vmem [thread:$0]  %s6, 32, %s88, [#allocation9]
    $region29: #{tpu_custom_call.1} parent=1 // pred_fallthru
      _
    // Predicated region
    $region30: #{tpu_custom_call.1} parent=1 // pred_check
      _
    $region31: #{tpu_custom_call.1} parent=1 // pred_check_branch
      %92 = sbr.rel (0) target = $region33
    $region32: #{tpu_custom_call.1} parent=1 // pred_region
      %s94 = ssub.s32 32, 32
      %95 = vsyncadd [#allocation12], %s94
      %s97 = sshll.u32 [#allocation11], 4
      %s98 = int_to_ptr.vmem [resolvable:$true] %s97
      %100 = dma.hbm_to_vmem [thread:$0]  %s7, 32, %s98, [#allocation12]
    $region33: #{tpu_custom_call.1} parent=1 // pred_fallthru
      _
    // Predicated region
    $region34: #{tpu_custom_call.1} parent=1 // pred_check
      _
    $region35: #{tpu_custom_call.1} parent=1 // pred_check_branch
      %102 = sbr.rel (0) target = $region37
    $region36: #{tpu_custom_call.1} parent=1 // pred_region
      %s104 = ssub.s32 32, 32
      %105 = vsyncadd [#allocation12], %s104
      %s107 = sshll.u32 [#allocation13], 4
      %s108 = int_to_ptr.vmem [resolvable:$true] %s107
      %110 = dma.hbm_to_vmem [thread:$0]  %s8, 32, %s108, [#allocation12]
    $region37: #{tpu_custom_call.1} parent=1 // pred_fallthru
      _
    // Predicated region
    $region38: #{tpu_custom_call.1} parent=1 // pred_check
      _
    $region39: #{tpu_custom_call.1} parent=1 // pred_check_branch
      %112 = sbr.rel (0) target = $region41
    $region40: #{tpu_custom_call.1} parent=1 // pred_region
      %s114 = ssub.s32 2048, 2048
      %115 = vsyncadd [#allocation15], %s114
      %s116 = sshll.u32 [#allocation14], 4
      %s117 = int_to_ptr.vmem [resolvable:$true] %s116
      %122 = dma.hbm_to_vmem [thread:$0]  %s9, 2048, %s117, [#allocation15], 64, 64, 4
    $region41: #{tpu_custom_call.1} parent=1 // pred_fallthru
      _
    // Predicated region
    $region42: #{tpu_custom_call.1} parent=1 // pred_check
      _
    $region43: #{tpu_custom_call.1} parent=1 // pred_check_branch
      %124 = sbr.rel (0) target = $region45
    $region44: #{tpu_custom_call.1} parent=1 // pred_region
      %s126 = ssub.s32 16, 16
      %127 = vsyncadd [#allocation15], %s126
      %s129 = sshll.u32 [#allocation16], 4
      %s130 = int_to_ptr.vmem [resolvable:$true] %s129
      %132 = dma.hbm_to_vmem [thread:$0]  %s10, 16, %s130, [#allocation15]
    $region45: #{tpu_custom_call.1} parent=1 // pred_fallthru
      _
    // Predicated region
    $region46: #{tpu_custom_call.1} parent=1 // pred_check
      _
    $region47: #{tpu_custom_call.1} parent=1 // pred_check_branch
      %134 = sbr.rel (0) target = $region49
    $region48: #{tpu_custom_call.1} parent=1 // pred_region
      %s136 = ssub.s32 16, 16
      %137 = vsyncadd [#allocation18], %s136
      %s139 = sshll.u32 [#allocation17], 4
      %s140 = int_to_ptr.vmem [resolvable:$true] %s139
      %142 = dma.hbm_to_vmem [thread:$0]  %s11, 16, %s140, [#allocation18]
    $region49: #{tpu_custom_call.1} parent=1 // pred_fallthru
      _
    // Predicated region
    $region50: #{tpu_custom_call.1} parent=1 // pred_check
      _
    $region51: #{tpu_custom_call.1} parent=1 // pred_check_branch
      %144 = sbr.rel (0) target = $region53
    $region52: #{tpu_custom_call.1} parent=1 // pred_region
      _
    $region53: #{tpu_custom_call.1} parent=1 // pred_fallthru
      _
    // Predicated region
    $region54: #{tpu_custom_call.1} parent=1 // pred_check
      _
    $region55: #{tpu_custom_call.1} parent=1 // pred_check_branch
      %146 = sbr.rel (0) target = $region57
    $region56: #{tpu_custom_call.1} parent=1 // pred_region
      _
    $region57: #{tpu_custom_call.1} parent=1 // pred_fallthru
      _
    // Predicated region
    $region58: #{tpu_custom_call.1} parent=1 // pred_check
      _
    $region59: #{tpu_custom_call.1} parent=1 // pred_check_branch
      %148 = sbr.rel (0) target = $region61
    $region60: #{tpu_custom_call.1} parent=1 // pred_region
      _
    $region61: #{tpu_custom_call.1} parent=1 // pred_fallthru
      _
    // Predicated region
    $region62: #{tpu_custom_call.1} parent=1 // pred_check
      _
    $region63: #{tpu_custom_call.1} parent=1 // pred_check_branch
      %150 = sbr.rel (0) target = $region65
    $region64: #{tpu_custom_call.1} parent=1 // pred_region
      _
    $region65: #{tpu_custom_call.1} parent=1 // pred_fallthru
      _
    // Predicated region
    $region66: #{tpu_custom_call.1} parent=1 // pred_check
      _
    $region67: #{tpu_custom_call.1} parent=1 // pred_check_branch
      %152 = sbr.rel (0) target = $region69
    $region68: #{tpu_custom_call.1} parent=1 // pred_region
      _
    $region69: #{tpu_custom_call.1} parent=1 // pred_fallthru
      _
    // Predicated region
    $region70: #{tpu_custom_call.1} parent=1 // pred_check
      _
    $region71: #{tpu_custom_call.1} parent=1 // pred_check_branch
      %154 = sbr.rel (0) target = $region73
    $region72: #{tpu_custom_call.1} parent=1 // pred_region
      _
    $region73: #{tpu_custom_call.1} parent=1 // pred_fallthru
      _
    // Predicated region
    $region74: #{tpu_custom_call.1} parent=1 // pred_check
      _
    $region75: #{tpu_custom_call.1} parent=1 // pred_check_branch
      %156 = sbr.rel (0) target = $region77
    $region76: #{tpu_custom_call.1} parent=1 // pred_region
      _
    $region77: #{tpu_custom_call.1} parent=1 // pred_fallthru
      _
    // Predicated region
    $region78: #{tpu_custom_call.1} parent=1 // pred_check
      _
    $region79: #{tpu_custom_call.1} parent=1 // pred_check_branch
      %158 = sbr.rel (0) target = $region81
    $region80: #{tpu_custom_call.1} parent=1 // pred_region
      _
    $region81: #{tpu_custom_call.1} parent=1 // pred_fallthru
      _
    // Predicated region
    $region82: #{tpu_custom_call.1} parent=1 // pred_check
      _
    $region83: #{tpu_custom_call.1} parent=1 // pred_check_branch
      %160 = sbr.rel (0) target = $region85
    $region84: #{tpu_custom_call.1} parent=1 // pred_region
      _
    $region85: #{tpu_custom_call.1} parent=1 // pred_fallthru
      _
    // Predicated region
    $region86: #{tpu_custom_call.1} parent=1 // pred_check
      _
    $region87: #{tpu_custom_call.1} parent=1 // pred_check_branch
      %162 = sbr.rel (0) target = $region89
    $region88: #{tpu_custom_call.1} parent=1 // pred_region
      %163 = dma.done [#allocation3], 256
    $region89: #{tpu_custom_call.1} parent=1 // pred_fallthru
      _
    // Predicated region
    $region90: #{tpu_custom_call.1} parent=1 // pred_check
      _
    $region91: #{tpu_custom_call.1} parent=1 // pred_check_branch
      %165 = sbr.rel (0) target = $region93
    $region92: #{tpu_custom_call.1} parent=1 // pred_region
      %166 = dma.done [#allocation6], 256
    $region93: #{tpu_custom_call.1} parent=1 // pred_fallthru
      _
    // Predicated region
    $region94: #{tpu_custom_call.1} parent=1 // pred_check
      _
    $region95: #{tpu_custom_call.1} parent=1 // pred_check_branch
      %168 = sbr.rel (0) target = $region97
    $region96: #{tpu_custom_call.1} parent=1 // pred_region
      %169 = dma.done [#allocation6], 16
    $region97: #{tpu_custom_call.1} parent=1 // pred_fallthru
      _
    // Predicated region
    $region98: #{tpu_custom_call.1} parent=1 // pred_check
      _
    $region99: #{tpu_custom_call.1} parent=1 // pred_check_branch
      %171 = sbr.rel (0) target = $region101
    $region100: #{tpu_custom_call.1} parent=1 // pred_region
      %172 = dma.done [#allocation9], 16
    $region101: #{tpu_custom_call.1} parent=1 // pred_fallthru
      _
    // Predicated region
    $region102: #{tpu_custom_call.1} parent=1 // pred_check
      _
    $region103: #{tpu_custom_call.1} parent=1 // pred_check_branch
      %174 = sbr.rel (0) target = $region105
    $region104: #{tpu_custom_call.1} parent=1 // pred_region
      %175 = dma.done [#allocation9], 32
    $region105: #{tpu_custom_call.1} parent=1 // pred_fallthru
      _
    // Predicated region
    $region106: #{tpu_custom_call.1} parent=1 // pred_check
      _
    $region107: #{tpu_custom_call.1} parent=1 // pred_check_branch
      %177 = sbr.rel (0) target = $region109
    $region108: #{tpu_custom_call.1} parent=1 // pred_region
      %178 = dma.done [#allocation12], 32
    $region109: #{tpu_custom_call.1} parent=1 // pred_fallthru
      _
    // Predicated region
    $region110: #{tpu_custom_call.1} parent=1 // pred_check
      _
    $region111: #{tpu_custom_call.1} parent=1 // pred_check_branch
      %180 = sbr.rel (0) target = $region113
    $region112: #{tpu_custom_call.1} parent=1 // pred_region
      %181 = dma.done [#allocation12], 32
    $region113: #{tpu_custom_call.1} parent=1 // pred_fallthru
      _
    // Predicated region
    $region114: #{tpu_custom_call.1} parent=1 // pred_check
      _
    $region115: #{tpu_custom_call.1} parent=1 // pred_check_branch
      %183 = sbr.rel (0) target = $region117
    $region116: #{tpu_custom_call.1} parent=1 // pred_region
      %184 = dma.done [#allocation15], 2048
    $region117: #{tpu_custom_call.1} parent=1 // pred_fallthru
      _
    // Predicated region
    $region118: #{tpu_custom_call.1} parent=1 // pred_check
      _
    $region119: #{tpu_custom_call.1} parent=1 // pred_check_branch
      %186 = sbr.rel (0) target = $region121
    $region120: #{tpu_custom_call.1} parent=1 // pred_region
      %187 = dma.done [#allocation15], 16
    $region121: #{tpu_custom_call.1} parent=1 // pred_fallthru
      _
    // Predicated region
    $region122: #{tpu_custom_call.1} parent=1 // pred_check
      _
    $region123: #{tpu_custom_call.1} parent=1 // pred_check_branch
      %189 = sbr.rel (0) target = $region125
    $region124: #{tpu_custom_call.1} parent=1 // pred_region
      %190 = dma.done [#allocation18], 16
    $region125: #{tpu_custom_call.1} parent=1 // pred_fallthru
      _
    %v192 = vld [vmem:[#allocation2] sm:$0xff]
    %v193 = vld [vmem:[#allocation2 + $0x8] sm:$0xff]
    %v194 = vpack.c.bf16 %v193, %v192
    %v195 = vld [vmem:[#allocation5] sm:$0xf]
    %v196 = vld [vmem:[#allocation5 + $0x4] sm:$0xf]
    %v197 = vld [vmem:[#allocation5 + $0x8] sm:$0xf]
    %v198 = vld [vmem:[#allocation5 + $0xc] sm:$0xf]
    %v199 = vld [vmem:[%s2] sm:$0x1]
    %v201 = vlaneseq
    %v202 = vshrl.u32 %v201, 7
    %v203 = vsub.s32 0, %v202
    %v204 = vrot.slane %v199, %v203
    %v210 = vunpack.c.l.b16 %v195
    %v211 = vunpack.c.l.b16 %v196
    %v212 = vunpack.c.l.b16 %v197
    %v213 = vunpack.c.l.b16 %v198
    %v214 = vpack.c.b16 %v211, %v210
    %v215 = vpack.c.b16 %v213, %v212
    %vm218 = vcmask 261120
    %v220 = vsel %vm218, %v194, 0
    %222 = vmatprep.subr.bf16.mxu0 0
    %223 = vmatpush1.bf16.msra.mxu0 %v214
    %224 = vmatprep.subr.bf16.mxu0 0
    %225 = vmatpush1.bf16.msra.mxu0 %v215
    %226 = vmatprep.subr.bf16.mxu0 0
    %227 = vmatpush1.bf16.msra.mxu0 0
    %228 = vmatprep.subr.bf16.mxu0 0
    %229 = vmatpush1.bf16.msra.mxu0 0
    %230 = vmatprep.subr.bf16.mxu0 0
    %231 = vmatpush1.bf16.msra.mxu0 0
    %232 = vmatprep.subr.bf16.mxu0 0
    %233 = vmatpush1.bf16.msra.mxu0 0
    %234 = vmatprep.subr.bf16.mxu0 0
    %235 = vmatpush1.bf16.msra.mxu0 0
    %236 = vmatprep.subr.bf16.mxu0 0
    %237 = vmatpush1.bf16.msra.mxu0 0
    %238 = vmatprep.subr.bf16.mxu0 0
    %239 = vmatpush1.bf16.msra.mxu0 0
    %240 = vmatprep.subr.bf16.mxu0 0
    %241 = vmatpush1.bf16.msra.mxu0 0
    %242 = vmatprep.subr.bf16.mxu0 0
    %243 = vmatpush1.bf16.msra.mxu0 0
    %244 = vmatprep.subr.bf16.mxu0 0
    %245 = vmatpush1.bf16.msra.mxu0 0
    %246 = vmatprep.subr.bf16.mxu0 0
    %247 = vmatpush1.bf16.msra.mxu0 0
    %248 = vmatprep.subr.bf16.mxu0 0
    %249 = vmatpush1.bf16.msra.mxu0 0
    %250 = vmatprep.subr.bf16.mxu0 0
    %251 = vmatpush1.bf16.msra.mxu0 0
    %252 = vmatprep.subr.bf16.mxu0 0
    %253 = vmatpush1.bf16.msra.mxu0 0
    %254 = vmatprep.mubr.bf16.mxu0 0
    %255 = vmatmul.mubr.bf16.gmra.mrb[0].mxu0 %v220
    %v256 = vpop.f32.mrb[0].mxu0
    %v257 = vadd.f32 %v204, %v256
    %v258 = vpop.f32.mrb[0].mxu0
    %v259 = vpop.f32.mrb[0].mxu0
    %v260 = vadd.f32 %v204, %v259
    %v261 = vpop.f32.mrb[0].mxu0
    %262 = vdwg.mxu0
    %263 = vadd.xlane.f32.xlu0 %v257
    %v264 = vpop.xlane.xlu0 %263
    %265 = vadd.xlane.f32.xlu0 %v260
    %v266 = vpop.xlane.xlu0 %265
    %v267 = vrcp.pop 128.0
    %v268 = vmul.f32 %v264, %v267
    %v269 = vmul.f32 %v266, %v267
    %v270 = vsub.f32 %v257, %v268
    %v271 = vsub.f32 %v260, %v269
    %v272 = vmul.f32 %v270, %v270
    %v273 = vmul.f32 %v271, %v271
    %274 = vadd.xlane.f32.xlu0 %v272
    %v275 = vpop.xlane.xlu0 %274
    %276 = vadd.xlane.f32.xlu0 %v273
    %v277 = vpop.xlane.xlu0 %276
    %v278 = vmul.f32 %v275, %v267
    %v279 = vmul.f32 %v277, %v267
    %v280 = vld [vmem:[#allocation7] sm:$0x1]
    %v281 = vadd.f32 %v278, 1e-05
    %v282 = vadd.f32 %v279, 1e-05
    %v283 = vrsqrt.pop %v281
    %v284 = vrsqrt.pop %v282
    %v286 = vlaneseq
    %v287 = vshrl.u32 %v286, 7
    %v288 = vsub.s32 0, %v287
    %v289 = vrot.slane %v280, %v288
    %v291 = vmul.f32 %v289, %v283
    %v292 = vmul.f32 %v289, %v284
    %v293 = vmul.f32 %v270, %v291
    %v294 = vmul.f32 %v271, %v292
    %v295 = vld [vmem:[#allocation8] sm:$0x1]
    %v297 = vlaneseq
    %v298 = vshrl.u32 %v297, 7
    %v299 = vsub.s32 0, %v298
    %v300 = vrot.slane %v295, %v299
    %v302 = vadd.f32 %v293, %v300
    %v303 = vadd.f32 %v294, %v300
    %v304 = vmax.f32 %v302, 0.0
    %v305 = vmax.f32 %v303, 0.0
    %v306 = vpack.c.bf16 %v305, %v304
    %v307 = vld [vmem:[%s5] sm:$0xff]
    %v308 = vld [vmem:[%s5 + $0x8] sm:$0xff]
    %v309 = vld [vmem:[%s5 + $0x10] sm:$0xff]
    %v310 = vld [vmem:[%s5 + $0x18] sm:$0xff]
    %v311 = vld [vmem:[%s5 + $0x20] sm:$0xff]
    %v312 = vld [vmem:[%s5 + $0x28] sm:$0xff]
    %v313 = vld [vmem:[%s5 + $0x30] sm:$0xff]
    %v314 = vld [vmem:[%s5 + $0x38] sm:$0xff]
    %v315 = vld [vmem:[%s5 + $0x40] sm:$0xff]
    %v316 = vld [vmem:[%s5 + $0x48] sm:$0xff]
    %v317 = vld [vmem:[%s5 + $0x50] sm:$0xff]
    %v318 = vld [vmem:[%s5 + $0x58] sm:$0xff]
    %v319 = vld [vmem:[%s5 + $0x60] sm:$0xff]
    %v320 = vld [vmem:[%s5 + $0x68] sm:$0xff]
    %v321 = vld [vmem:[%s5 + $0x70] sm:$0xff]
    %v322 = vld [vmem:[%s5 + $0x78] sm:$0xff]
    %v323 = vld [vmem:[#allocation10] sm:$0x3]
    %v325 = vlaneseq
    %v326 = vshrl.u32 %v325, 7
    %v327 = vsub.s32 0, %v326
    %v328 = vrot.slane %v323, %v327
    %v329 = vlaneseq
    %v330 = vshrl.u32 %v329, 7
    %v331 = vsub.s32 1, %v330
    %v332 = vrot.slane %v323, %v331
    %v351 = vunpack.c.l.b16 %v307
    %v352 = vunpack.c.h.b16 %v307
    %v353 = vunpack.c.l.b16 %v308
    %v354 = vunpack.c.h.b16 %v308
    %v355 = vunpack.c.l.b16 %v309
    %v356 = vunpack.c.h.b16 %v309
    %v357 = vunpack.c.l.b16 %v310
    %v358 = vunpack.c.h.b16 %v310
    %v359 = vunpack.c.l.b16 %v311
    %v360 = vunpack.c.h.b16 %v311
    %v361 = vunpack.c.l.b16 %v312
    %v362 = vunpack.c.h.b16 %v312
    %v363 = vunpack.c.l.b16 %v313
    %v364 = vunpack.c.h.b16 %v313
    %v365 = vunpack.c.l.b16 %v314
    %v366 = vunpack.c.h.b16 %v314
    %v367 = vunpack.c.l.b16 %v315
    %v368 = vunpack.c.h.b16 %v315
    %v369 = vunpack.c.l.b16 %v316
    %v370 = vunpack.c.h.b16 %v316
    %v371 = vunpack.c.l.b16 %v317
    %v372 = vunpack.c.h.b16 %v317
    %v373 = vunpack.c.l.b16 %v318
    %v374 = vunpack.c.h.b16 %v318
    %v375 = vunpack.c.l.b16 %v319
    %v376 = vunpack.c.h.b16 %v319
    %v377 = vunpack.c.l.b16 %v320
    %v378 = vunpack.c.h.b16 %v320
    %v379 = vunpack.c.l.b16 %v321
    %v380 = vunpack.c.h.b16 %v321
    %v381 = vunpack.c.l.b16 %v322
    %v382 = vunpack.c.h.b16 %v322
    %v383 = vpack.c.b16 %v353, %v351
    %v384 = vpack.c.b16 %v354, %v352
    %v385 = vpack.c.b16 %v357, %v355
    %v386 = vpack.c.b16 %v358, %v356
    %v387 = vpack.c.b16 %v361, %v359
    %v388 = vpack.c.b16 %v362, %v360
    %v389 = vpack.c.b16 %v365, %v363
    %v390 = vpack.c.b16 %v366, %v364
    %v391 = vpack.c.b16 %v369, %v367
    %v392 = vpack.c.b16 %v370, %v368
    %v393 = vpack.c.b16 %v373, %v371
    %v394 = vpack.c.b16 %v374, %v372
    %v395 = vpack.c.b16 %v377, %v375
    %v396 = vpack.c.b16 %v378, %v376
    %v397 = vpack.c.b16 %v381, %v379
    %v398 = vpack.c.b16 %v382, %v380
    %415 = vmatprep.subr.bf16.mxu0 %v384
    %416 = vmatpush1.bf16.msra.mxu0 %v383
    %417 = vmatprep.subr.bf16.mxu0 %v386
    %418 = vmatpush1.bf16.msra.mxu0 %v385
    %419 = vmatprep.subr.bf16.mxu0 %v388
    %420 = vmatpush1.bf16.msra.mxu0 %v387
    %421 = vmatprep.subr.bf16.mxu0 %v390
    %422 = vmatpush1.bf16.msra.mxu0 %v389
    %423 = vmatprep.subr.bf16.mxu0 %v392
    %424 = vmatpush1.bf16.msra.mxu0 %v391
    %425 = vmatprep.subr.bf16.mxu0 %v394
    %426 = vmatpush1.bf16.msra.mxu0 %v393
    %427 = vmatprep.subr.bf16.mxu0 %v396
    %428 = vmatpush1.bf16.msra.mxu0 %v395
    %429 = vmatprep.subr.bf16.mxu0 %v398
    %430 = vmatpush1.bf16.msra.mxu0 %v397
    %431 = vmatprep.subr.bf16.mxu0 0
    %432 = vmatpush1.bf16.msra.mxu0 0
    %433 = vmatprep.subr.bf16.mxu0 0
    %434 = vmatpush1.bf16.msra.mxu0 0
    %435 = vmatprep.subr.bf16.mxu0 0
    %436 = vmatpush1.bf16.msra.mxu0 0
    %437 = vmatprep.subr.bf16.mxu0 0
    %438 = vmatpush1.bf16.msra.mxu0 0
    %439 = vmatprep.subr.bf16.mxu0 0
    %440 = vmatpush1.bf16.msra.mxu0 0
    %441 = vmatprep.subr.bf16.mxu0 0
    %442 = vmatpush1.bf16.msra.mxu0 0
    %443 = vmatprep.subr.bf16.mxu0 0
    %444 = vmatpush1.bf16.msra.mxu0 0
    %445 = vmatprep.subr.bf16.mxu0 0
    %446 = vmatpush1.bf16.msra.mxu0 0
    %447 = vmatprep.mubr.bf16.mxu0 0
    %448 = vmatmul.mubr.bf16.gmra.mrb[0].mxu0 %v306
    %v449 = vpop.f32.mrb[0].mxu0
    %v450 = vadd.f32 %v328, %v449
    %v451 = vpop.f32.mrb[0].mxu0
    %v452 = vadd.f32 %v332, %v451
    %v453 = vpop.f32.mrb[0].mxu0
    %v454 = vadd.f32 %v328, %v453
    %v455 = vpop.f32.mrb[0].mxu0
    %v456 = vadd.f32 %v332, %v455
    %457 = vdwg.mxu0
    %v458 = vadd.f32 %v450, %v452
    %459 = vadd.xlane.f32.xlu0 %v458
    %v460 = vpop.xlane.xlu0 %459
    %v461 = vadd.f32 %v454, %v456
    %462 = vadd.xlane.f32.xlu0 %v461
    %v463 = vpop.xlane.xlu0 %462
    %v464 = vrcp.pop 256.0
    %v465 = vmul.f32 %v460, %v464
    %v466 = vmul.f32 %v463, %v464
    %v467 = vsub.f32 %v450, %v465
    %v468 = vsub.f32 %v452, %v465
    %v469 = vsub.f32 %v454, %v466
    %v470 = vsub.f32 %v456, %v466
    %v471 = vmul.f32 %v467, %v467
    %v472 = vmul.f32 %v468, %v468
    %v473 = vmul.f32 %v469, %v469
    %v474 = vmul.f32 %v470, %v470
    %v475 = vadd.f32 %v471, %v472
    %476 = vadd.xlane.f32.xlu0 %v475
    %v477 = vpop.xlane.xlu0 %476
    %v478 = vadd.f32 %v473, %v474
    %479 = vadd.xlane.f32.xlu0 %v478
    %v480 = vpop.xlane.xlu0 %479
    %v481 = vmul.f32 %v477, %v464
    %v482 = vmul.f32 %v480, %v464
    %v483 = vld [vmem:[#allocation11] sm:$0x3]
    %v484 = vadd.f32 %v481, 1e-05
    %v485 = vadd.f32 %v482, 1e-05
    %v486 = vrsqrt.pop %v484
    %v487 = vrsqrt.pop %v485
    %v489 = vlaneseq
    %v490 = vshrl.u32 %v489, 7
    %v491 = vsub.s32 0, %v490
    %v492 = vrot.slane %v483, %v491
    %v493 = vlaneseq
    %v494 = vshrl.u32 %v493, 7
    %v495 = vsub.s32 1, %v494
    %v496 = vrot.slane %v483, %v495
    %v499 = vmul.f32 %v492, %v486
    %v500 = vmul.f32 %v496, %v486
    %v501 = vmul.f32 %v492, %v487
    %v502 = vmul.f32 %v496, %v487
    %v503 = vmul.f32 %v467, %v499
    %v504 = vmul.f32 %v468, %v500
    %v505 = vmul.f32 %v469, %v501
    %v506 = vmul.f32 %v470, %v502
    %v507 = vld [vmem:[#allocation13] sm:$0x3]
    %v509 = vlaneseq
    %v510 = vshrl.u32 %v509, 7
    %v511 = vsub.s32 0, %v510
    %v512 = vrot.slane %v507, %v511
    %v513 = vlaneseq
    %v514 = vshrl.u32 %v513, 7
    %v515 = vsub.s32 1, %v514
    %v516 = vrot.slane %v507, %v515
    %v519 = vadd.f32 %v503, %v512
    %v520 = vadd.f32 %v504, %v516
    %v521 = vadd.f32 %v505, %v512
    %v522 = vadd.f32 %v506, %v516
    %v523 = vmax.f32 %v519, 0.0
    %v524 = vmax.f32 %v520, 0.0
    %v525 = vmax.f32 %v521, 0.0
    %v526 = vmax.f32 %v522, 0.0
    %v527 = vpack.c.bf16 %v525, %v523
    %v528 = vpack.c.bf16 %v526, %v524
    %v529 = vld [vmem:[#allocation14] sm:$0xf]
    %v530 = vld [vmem:[#allocation14 + $0x4] sm:$0xf]
    %v531 = vld [vmem:[#allocation14 + $0x8] sm:$0xf]
    %v532 = vld [vmem:[#allocation14 + $0xc] sm:$0xf]
    %v533 = vld [vmem:[#allocation14 + $0x10] sm:$0xf]
    %v534 = vld [vmem:[#allocation14 + $0x14] sm:$0xf]
    %v535 = vld [vmem:[#allocation14 + $0x18] sm:$0xf]
    %v536 = vld [vmem:[#allocation14 + $0x1c] sm:$0xf]
    %v537 = vld [vmem:[#allocation14 + $0x20] sm:$0xf]
    %v538 = vld [vmem:[#allocation14 + $0x24] sm:$0xf]
    %v539 = vld [vmem:[#allocation14 + $0x28] sm:$0xf]
    %v540 = vld [vmem:[#allocation14 + $0x2c] sm:$0xf]
    %v541 = vld [vmem:[#allocation14 + $0x30] sm:$0xf]
    %v542 = vld [vmem:[#allocation14 + $0x34] sm:$0xf]
    %v543 = vld [vmem:[#allocation14 + $0x38] sm:$0xf]
    %v544 = vld [vmem:[#allocation14 + $0x3c] sm:$0xf]
    %v545 = vld [vmem:[#allocation14 + $0x40] sm:$0xf]
    %v546 = vld [vmem:[#allocation14 + $0x44] sm:$0xf]
    %v547 = vld [vmem:[#allocation14 + $0x48] sm:$0xf]
    %v548 = vld [vmem:[#allocation14 + $0x4c] sm:$0xf]
    %v549 = vld [vmem:[#allocation14 + $0x50] sm:$0xf]
    %v550 = vld [vmem:[#allocation14 + $0x54] sm:$0xf]
    %v551 = vld [vmem:[#allocation14 + $0x58] sm:$0xf]
    %v552 = vld [vmem:[#allocation14 + $0x5c] sm:$0xf]
    %v553 = vld [vmem:[#allocation14 + $0x60] sm:$0xf]
    %v554 = vld [vmem:[#allocation14 + $0x64] sm:$0xf]
    %v555 = vld [vmem:[#allocation14 + $0x68] sm:$0xf]
    %v556 = vld [vmem:[#allocation14 + $0x6c] sm:$0xf]
    %v557 = vld [vmem:[#allocation14 + $0x70] sm:$0xf]
    %v558 = vld [vmem:[#allocation14 + $0x74] sm:$0xf]
    %v559 = vld [vmem:[#allocation14 + $0x78] sm:$0xf]
    %v560 = vld [vmem:[#allocation14 + $0x7c] sm:$0xf]
    %v561 = vld [vmem:[#allocation16] sm:$0x1]
    %v563 = vlaneseq
    %v564 = vshrl.u32 %v563, 7
    %v565 = vsub.s32 0, %v564
    %v566 = vrot.slane %v561, %v565
    %v600 = vunpack.c.l.b16 %v529
    %v601 = vunpack.c.l.b16 %v530
    %v602 = vunpack.c.l.b16 %v531
    %v603 = vunpack.c.l.b16 %v532
    %v604 = vunpack.c.l.b16 %v533
    %v605 = vunpack.c.l.b16 %v534
    %v606 = vunpack.c.l.b16 %v535
    %v607 = vunpack.c.l.b16 %v536
    %v608 = vunpack.c.l.b16 %v537
    %v609 = vunpack.c.l.b16 %v538
    %v610 = vunpack.c.l.b16 %v539
    %v611 = vunpack.c.l.b16 %v540
    %v612 = vunpack.c.l.b16 %v541
    %v613 = vunpack.c.l.b16 %v542
    %v614 = vunpack.c.l.b16 %v543
    %v615 = vunpack.c.l.b16 %v544
    %v616 = vunpack.c.l.b16 %v545
    %v617 = vunpack.c.l.b16 %v546
    %v618 = vunpack.c.l.b16 %v547
    %v619 = vunpack.c.l.b16 %v548
    %v620 = vunpack.c.l.b16 %v549
    %v621 = vunpack.c.l.b16 %v550
    %v622 = vunpack.c.l.b16 %v551
    %v623 = vunpack.c.l.b16 %v552
    %v624 = vunpack.c.l.b16 %v553
    %v625 = vunpack.c.l.b16 %v554
    %v626 = vunpack.c.l.b16 %v555
    %v627 = vunpack.c.l.b16 %v556
    %v628 = vunpack.c.l.b16 %v557
    %v629 = vunpack.c.l.b16 %v558
    %v630 = vunpack.c.l.b16 %v559
    %v631 = vunpack.c.l.b16 %v560
    %v632 = vpack.c.b16 %v601, %v600
    %v633 = vpack.c.b16 %v603, %v602
    %v634 = vpack.c.b16 %v605, %v604
    %v635 = vpack.c.b16 %v607, %v606
    %v636 = vpack.c.b16 %v609, %v608
    %v637 = vpack.c.b16 %v611, %v610
    %v638 = vpack.c.b16 %v613, %v612
    %v639 = vpack.c.b16 %v615, %v614
    %v640 = vpack.c.b16 %v617, %v616
    %v641 = vpack.c.b16 %v619, %v618
    %v642 = vpack.c.b16 %v621, %v620
    %v643 = vpack.c.b16 %v623, %v622
    %v644 = vpack.c.b16 %v625, %v624
    %v645 = vpack.c.b16 %v627, %v626
    %v646 = vpack.c.b16 %v629, %v628
    %v647 = vpack.c.b16 %v631, %v630
    %664 = vmatprep.subr.bf16.mxu0 0
    %665 = vmatpush1.bf16.msra.mxu0 %v632
    %666 = vmatprep.subr.bf16.mxu0 0
    %667 = vmatpush1.bf16.msra.mxu0 %v633
    %668 = vmatprep.subr.bf16.mxu0 0
    %669 = vmatpush1.bf16.msra.mxu0 %v634
    %670 = vmatprep.subr.bf16.mxu0 0
    %671 = vmatpush1.bf16.msra.mxu0 %v635
    %672 = vmatprep.subr.bf16.mxu0 0
    %673 = vmatpush1.bf16.msra.mxu0 %v636
    %674 = vmatprep.subr.bf16.mxu0 0
    %675 = vmatpush1.bf16.msra.mxu0 %v637
    %676 = vmatprep.subr.bf16.mxu0 0
    %677 = vmatpush1.bf16.msra.mxu0 %v638
    %678 = vmatprep.subr.bf16.mxu0 0
    %679 = vmatpush1.bf16.msra.mxu0 %v639
    %680 = vmatprep.subr.bf16.mxu0 0
    %681 = vmatpush1.bf16.msra.mxu0 %v640
    %682 = vmatprep.subr.bf16.mxu0 0
    %683 = vmatpush1.bf16.msra.mxu0 %v641
    %684 = vmatprep.subr.bf16.mxu0 0
    %685 = vmatpush1.bf16.msra.mxu0 %v642
    %686 = vmatprep.subr.bf16.mxu0 0
    %687 = vmatpush1.bf16.msra.mxu0 %v643
    %688 = vmatprep.subr.bf16.mxu0 0
    %689 = vmatpush1.bf16.msra.mxu0 %v644
    %690 = vmatprep.subr.bf16.mxu0 0
    %691 = vmatpush1.bf16.msra.mxu0 %v645
    %692 = vmatprep.subr.bf16.mxu0 0
    %693 = vmatpush1.bf16.msra.mxu0 %v646
    %694 = vmatprep.subr.bf16.mxu0 0
    %695 = vmatpush1.bf16.msra.mxu0 %v647
    %696 = vmatprep.mubr.bf16.mxu0 %v528
    %697 = vmatmul.mubr.bf16.gmra.mrb[0].mxu0 %v527
    %v698 = vpop.f32.mrb[0].mxu0
    %v699 = vadd.f32 %v566, %v698
    %v700 = vpop.f32.mrb[0].mxu0
    %v701 = vpop.f32.mrb[0].mxu0
    %v702 = vadd.f32 %v566, %v701
    %v703 = vpop.f32.mrb[0].mxu0
    %704 = vdwg.mxu0
    %705 = vadd.xlane.f32.xlu0 %v699
    %v706 = vpop.xlane.xlu0 %705
    %707 = vadd.xlane.f32.xlu0 %v702
    %v708 = vpop.xlane.xlu0 %707
    %v709 = vmul.f32 %v706, %v267
    %v710 = vmul.f32 %v708, %v267
    %v711 = vsub.f32 %v699, %v709
    %v712 = vsub.f32 %v702, %v710
    %v713 = vmul.f32 %v711, %v711
    %v714 = vmul.f32 %v712, %v712
    %715 = vadd.xlane.f32.xlu0 %v713
    %v716 = vpop.xlane.xlu0 %715
    %717 = vadd.xlane.f32.xlu0 %v714
    %v718 = vpop.xlane.xlu0 %717
    %v719 = vmul.f32 %v716, %v267
    %v720 = vmul.f32 %v718, %v267
    %v721 = vld [vmem:[#allocation17] sm:$0x1]
    %v722 = vadd.f32 %v719, 1e-05
    %v723 = vadd.f32 %v720, 1e-05
    %v724 = vrsqrt.pop %v722
    %v725 = vrsqrt.pop %v723
    %v727 = vlaneseq
    %v728 = vshrl.u32 %v727, 7
    %v729 = vsub.s32 0, %v728
    %v730 = vrot.slane %v721, %v729
    %v732 = vmul.f32 %v730, %v724
    %v733 = vmul.f32 %v730, %v725
    %v734 = vmul.f32 %v711, %v732
    %v735 = vmul.f32 %v712, %v733
    %v736 = vld [vmem:[%s12] sm:$0x1]
    %v738 = vlaneseq
    %v739 = vshrl.u32 %v738, 7
    %v740 = vsub.s32 0, %v739
    %v741 = vrot.slane %v736, %v740
    %v743 = vadd.f32 %v734, %v741
    %v744 = vadd.f32 %v735, %v741
    %v745 = vmax.f32 %v743, 0.0
    %v746 = vmax.f32 %v744, 0.0
    %v747 = vpack.c.bf16 %v746, %v745
    %v748 = vld [vmem:[%s13] sm:$0xf]
    %v749 = vld [vmem:[%s13 + $0x4] sm:$0xf]
    %v750 = vld [vmem:[%s13 + $0x8] sm:$0xf]
    %v751 = vld [vmem:[%s13 + $0xc] sm:$0xf]
    %v752 = vld [vmem:[%s13 + $0x10] sm:$0xf]
    %v753 = vld [vmem:[%s13 + $0x14] sm:$0xf]
    %v754 = vld [vmem:[%s13 + $0x18] sm:$0xf]
    %v755 = vld [vmem:[%s13 + $0x1c] sm:$0xf]
    %v756 = vld [vmem:[%s13 + $0x20] sm:$0xf]
    %v757 = vld [vmem:[%s13 + $0x24] sm:$0xf]
    %v758 = vld [vmem:[%s13 + $0x28] sm:$0xf]
    %v759 = vld [vmem:[%s13 + $0x2c] sm:$0xf]
    %v760 = vld [vmem:[%s13 + $0x30] sm:$0xf]
    %v761 = vld [vmem:[%s13 + $0x34] sm:$0xf]
    %v762 = vld [vmem:[%s13 + $0x38] sm:$0xf]
    %v763 = vld [vmem:[%s13 + $0x3c] sm:$0xf]
    %v764 = vld [vmem:[%s14] sm:$0x1]
    %v766 = vlaneseq
    %v767 = vshrl.u32 %v766, 7
    %v768 = vsub.s32 0, %v767
    %v769 = vrot.slane %v764, %v768
    %v787 = vunpack.c.l.b16 %v748
    %v788 = vunpack.c.l.b16 %v749
    %v789 = vunpack.c.l.b16 %v750
    %v790 = vunpack.c.l.b16 %v751
    %v791 = vunpack.c.l.b16 %v752
    %v792 = vunpack.c.l.b16 %v753
    %v793 = vunpack.c.l.b16 %v754
    %v794 = vunpack.c.l.b16 %v755
    %v795 = vunpack.c.l.b16 %v756
    %v796 = vunpack.c.l.b16 %v757
    %v797 = vunpack.c.l.b16 %v758
    %v798 = vunpack.c.l.b16 %v759
    %v799 = vunpack.c.l.b16 %v760
    %v800 = vunpack.c.l.b16 %v761
    %v801 = vunpack.c.l.b16 %v762
    %v802 = vunpack.c.l.b16 %v763
    %v803 = vpack.c.b16 %v788, %v787
    %v804 = vpack.c.b16 %v790, %v789
    %v805 = vpack.c.b16 %v792, %v791
    %v806 = vpack.c.b16 %v794, %v793
    %v807 = vpack.c.b16 %v796, %v795
    %v808 = vpack.c.b16 %v798, %v797
    %v809 = vpack.c.b16 %v800, %v799
    %v810 = vpack.c.b16 %v802, %v801
    %819 = vmatprep.subr.bf16.mxu0 0
    %820 = vmatpush1.bf16.msra.mxu0 %v803
    %821 = vmatprep.subr.bf16.mxu0 0
    %822 = vmatpush1.bf16.msra.mxu0 %v804
    %823 = vmatprep.subr.bf16.mxu0 0
    %824 = vmatpush1.bf16.msra.mxu0 %v805
    %825 = vmatprep.subr.bf16.mxu0 0
    %826 = vmatpush1.bf16.msra.mxu0 %v806
    %827 = vmatprep.subr.bf16.mxu0 0
    %828 = vmatpush1.bf16.msra.mxu0 %v807
    %829 = vmatprep.subr.bf16.mxu0 0
    %830 = vmatpush1.bf16.msra.mxu0 %v808
    %831 = vmatprep.subr.bf16.mxu0 0
    %832 = vmatpush1.bf16.msra.mxu0 %v809
    %833 = vmatprep.subr.bf16.mxu0 0
    %834 = vmatpush1.bf16.msra.mxu0 %v810
    %835 = vmatprep.subr.bf16.mxu0 0
    %836 = vmatpush1.bf16.msra.mxu0 0
    %837 = vmatprep.subr.bf16.mxu0 0
    %838 = vmatpush1.bf16.msra.mxu0 0
    %839 = vmatprep.subr.bf16.mxu0 0
    %840 = vmatpush1.bf16.msra.mxu0 0
    %841 = vmatprep.subr.bf16.mxu0 0
    %842 = vmatpush1.bf16.msra.mxu0 0
    %843 = vmatprep.subr.bf16.mxu0 0
    %844 = vmatpush1.bf16.msra.mxu0 0
    %845 = vmatprep.subr.bf16.mxu0 0
    %846 = vmatpush1.bf16.msra.mxu0 0
    %847 = vmatprep.subr.bf16.mxu0 0
    %848 = vmatpush1.bf16.msra.mxu0 0
    %849 = vmatprep.subr.bf16.mxu0 0
    %850 = vmatpush1.bf16.msra.mxu0 0
    %851 = vmatprep.mubr.bf16.mxu0 0
    %852 = vmatmul.mubr.bf16.gmra.mrb[0].mxu0 %v747
    %v853 = vpop.f32.mrb[0].mxu0
    %v854 = vadd.f32 %v769, %v853
    %v855 = vpop.f32.mrb[0].mxu0
    %v856 = vpop.f32.mrb[0].mxu0
    %v857 = vadd.f32 %v769, %v856
    %v858 = vpop.f32.mrb[0].mxu0
    %859 = vdwg.mxu0
    %vm860 = vcmask 523264
    %v861 = vsel %vm860, %v854, 0.0
    %862 = vadd.xlane.f32.xlu0 %v861
    %v863 = vpop.xlane.xlu0 %862
    %v864 = vsel %vm860, %v857, 0.0
    %865 = vadd.xlane.f32.xlu0 %v864
    %v866 = vpop.xlane.xlu0 %865
    %v867 = vrcp.pop 64.0
    %v868 = vmul.f32 %v863, %v867
    %v869 = vmul.f32 %v866, %v867
    %v870 = vsub.f32 %v854, %v868
    %v871 = vsub.f32 %v857, %v869
    %v872 = vmul.f32 %v870, %v870
    %v873 = vmul.f32 %v871, %v871
    %v874 = vsel %vm860, %v872, 0.0
    %875 = vadd.xlane.f32.xlu0 %v874
    %v876 = vpop.xlane.xlu0 %875
    %v877 = vsel %vm860, %v873, 0.0
    %878 = vadd.xlane.f32.xlu0 %v877
    %v879 = vpop.xlane.xlu0 %878
    %v880 = vmul.f32 %v876, %v867
    %v881 = vmul.f32 %v879, %v867
    %v882 = vld [vmem:[%s15] sm:$0x1]
    %v883 = vadd.f32 %v880, 1e-05
    %v884 = vadd.f32 %v881, 1e-05
    %v885 = vrsqrt.pop %v883
    %v886 = vrsqrt.pop %v884
    %v888 = vlaneseq
    %v889 = vshrl.u32 %v888, 7
    %v890 = vsub.s32 0, %v889
    %v891 = vrot.slane %v882, %v890
    %v893 = vmul.f32 %v891, %v885
    %v894 = vmul.f32 %v891, %v886
    %v895 = vmul.f32 %v870, %v893
    %v896 = vmul.f32 %v871, %v894
    %v897 = vld [vmem:[%s16] sm:$0x1]
    %v899 = vlaneseq
    %v900 = vshrl.u32 %v899, 7
    %v901 = vsub.s32 0, %v900
    %v902 = vrot.slane %v897, %v901
    %v904 = vadd.f32 %v895, %v902
    %v905 = vadd.f32 %v896, %v902
    %v906 = vmax.f32 %v904, 0.0
    %v907 = vmax.f32 %v905, 0.0
    %v908 = vpack.c.bf16 %v907, %v906
    %v909 = vld [vmem:[%s17] sm:$0xf]
    %v910 = vld [vmem:[%s17 + $0x4] sm:$0xf]
    %v911 = vld [vmem:[%s17 + $0x8] sm:$0xf]
    %v912 = vld [vmem:[%s17 + $0xc] sm:$0xf]
    %v913 = vld [vmem:[%s17 + $0x10] sm:$0xf]
    %v914 = vld [vmem:[%s17 + $0x14] sm:$0xf]
    %v915 = vld [vmem:[%s17 + $0x18] sm:$0xf]
    %v916 = vld [vmem:[%s17 + $0x1c] sm:$0xf]
    %v917 = vld [vmem:[%s18] sm:$0x1]
    %v919 = vlaneseq
    %v920 = vshrl.u32 %v919, 7
    %v921 = vsub.s32 0, %v920
    %v922 = vrot.slane %v917, %v921
    %v932 = vunpack.c.l.b16 %v909
    %v933 = vunpack.c.l.b16 %v910
    %v934 = vunpack.c.l.b16 %v911
    %v935 = vunpack.c.l.b16 %v912
    %v936 = vunpack.c.l.b16 %v913
    %v937 = vunpack.c.l.b16 %v914
    %v938 = vunpack.c.l.b16 %v915
    %v939 = vunpack.c.l.b16 %v916
    %v940 = vpack.c.b16 %v933, %v932
    %v941 = vpack.c.b16 %v935, %v934
    %v942 = vpack.c.b16 %v937, %v936
    %v943 = vpack.c.b16 %v939, %v938
    %v949 = vsel %vm860, %v908, 0
    %951 = vmatprep.subr.bf16.mxu0 0
    %952 = vmatpush1.bf16.msra.mxu0 %v940
    %953 = vmatprep.subr.bf16.mxu0 0
    %954 = vmatpush1.bf16.msra.mxu0 %v941
    %955 = vmatprep.subr.bf16.mxu0 0
    %956 = vmatpush1.bf16.msra.mxu0 %v942
    %957 = vmatprep.subr.bf16.mxu0 0
    %958 = vmatpush1.bf16.msra.mxu0 %v943
    %959 = vmatprep.subr.bf16.mxu0 0
    %960 = vmatpush1.bf16.msra.mxu0 0
    %961 = vmatprep.subr.bf16.mxu0 0
    %962 = vmatpush1.bf16.msra.mxu0 0
    %963 = vmatprep.subr.bf16.mxu0 0
    %964 = vmatpush1.bf16.msra.mxu0 0
    %965 = vmatprep.subr.bf16.mxu0 0
    %966 = vmatpush1.bf16.msra.mxu0 0
    %967 = vmatprep.subr.bf16.mxu0 0
    %968 = vmatpush1.bf16.msra.mxu0 0
    %969 = vmatprep.subr.bf16.mxu0 0
    %970 = vmatpush1.bf16.msra.mxu0 0
    %971 = vmatprep.subr.bf16.mxu0 0
    %972 = vmatpush1.bf16.msra.mxu0 0
    %973 = vmatprep.subr.bf16.mxu0 0
    %974 = vmatpush1.bf16.msra.mxu0 0
    %975 = vmatprep.subr.bf16.mxu0 0
    %976 = vmatpush1.bf16.msra.mxu0 0
    %977 = vmatprep.subr.bf16.mxu0 0
    %978 = vmatpush1.bf16.msra.mxu0 0
    %979 = vmatprep.subr.bf16.mxu0 0
    %980 = vmatpush1.bf16.msra.mxu0 0
    %981 = vmatprep.subr.bf16.mxu0 0
    %982 = vmatpush1.bf16.msra.mxu0 0
    %983 = vmatprep.mubr.bf16.mxu0 0
    %984 = vmatmul.mubr.bf16.gmra.mrb[0].mxu0 %v949
    %v985 = vpop.f32.mrb[0].mxu0
    %v986 = vadd.f32 %v922, %v985
    %v987 = vpop.f32.mrb[0].mxu0
    %v988 = vpop.f32.mrb[0].mxu0
    %v989 = vadd.f32 %v922, %v988
    %v990 = vpop.f32.mrb[0].mxu0
    %991 = vdwg.mxu0
    %v992 = vpack.c.bf16 %v989, %v986
    %v993 = vld [vmem:[%s19] sm:$0xf]
    %v994 = vld [vmem:[%s19 + $0x4] sm:$0xf]
    %v995 = vld [vmem:[%s20] sm:$0x1]
    %v997 = vlaneseq
    %v998 = vshrl.u32 %v997, 7
    %v999 = vsub.s32 0, %v998
    %v1000 = vrot.slane %v995, %v999
    %v1004 = vunpack.c.l.b16 %v993
    %v1005 = vunpack.c.l.b16 %v994
    %v1006 = vpack.c.b16 %v1005, %v1004
    %vm1008 = vcmask 130048
    %v1010 = vsel %vm1008, %v992, 0
    %1012 = vmatprep.subr.bf16.mxu0 0
    %1013 = vmatpush1.bf16.msra.mxu0 %v1006
    %1014 = vmatprep.subr.bf16.mxu0 0
    %1015 = vmatpush1.bf16.msra.mxu0 0
    %1016 = vmatprep.subr.bf16.mxu0 0
    %1017 = vmatpush1.bf16.msra.mxu0 0
    %1018 = vmatprep.subr.bf16.mxu0 0
    %1019 = vmatpush1.bf16.msra.mxu0 0
    %1020 = vmatprep.subr.bf16.mxu0 0
    %1021 = vmatpush1.bf16.msra.mxu0 0
    %1022 = vmatprep.subr.bf16.mxu0 0
    %1023 = vmatpush1.bf16.msra.mxu0 0
    %1024 = vmatprep.subr.bf16.mxu0 0
    %1025 = vmatpush1.bf16.msra.mxu0 0
    %1026 = vmatprep.subr.bf16.mxu0 0
    %1027 = vmatpush1.bf16.msra.mxu0 0
    %1028 = vmatprep.subr.bf16.mxu0 0
    %1029 = vmatpush1.bf16.msra.mxu0 0
    %1030 = vmatprep.subr.bf16.mxu0 0
    %1031 = vmatpush1.bf16.msra.mxu0 0
    %1032 = vmatprep.subr.bf16.mxu0 0
    %1033 = vmatpush1.bf16.msra.mxu0 0
    %1034 = vmatprep.subr.bf16.mxu0 0
    %1035 = vmatpush1.bf16.msra.mxu0 0
    %1036 = vmatprep.subr.bf16.mxu0 0
    %1037 = vmatpush1.bf16.msra.mxu0 0
    %1038 = vmatprep.subr.bf16.mxu0 0
    %1039 = vmatpush1.bf16.msra.mxu0 0
    %1040 = vmatprep.subr.bf16.mxu0 0
    %1041 = vmatpush1.bf16.msra.mxu0 0
    %1042 = vmatprep.subr.bf16.mxu0 0
    %1043 = vmatpush1.bf16.msra.mxu0 0
    %1044 = vmatprep.mubr.bf16.mxu0 0
    %1045 = vmatmul.mubr.bf16.gmra.mrb[0].mxu0 %v1010
    %v1046 = vpop.f32.mrb[0].mxu0
    %v1047 = vadd.f32 %v1000, %v1046
    %v1048 = vpop.f32.mrb[0].mxu0
    %v1049 = vpop.f32.mrb[0].mxu0
    %v1050 = vadd.f32 %v1000, %v1049
    %v1051 = vpop.f32.mrb[0].mxu0
    %1052 = vdwg.mxu0
    %1053 = vst [vmem:[#allocation19] sm:$0xff] %v1047
    %1054 = vst [vmem:[#allocation19 + $0x8] sm:$0xff] %v1050
    // Predicated region
    $region126: #{tpu_custom_call.1} parent=1 // pred_check
      _
    $region127: #{tpu_custom_call.1} parent=1 // pred_check_branch
      %1056 = sbr.rel (0) target = $region129
    $region128: #{tpu_custom_call.1} parent=1 // pred_region
      %s1058 = ssub.s32 256, 256
      %1059 = vsyncadd [#allocation4], %s1058
      %s1060 = sshll.u32 [#allocation19], 4
      %s1061 = int_to_ptr.vmem [resolvable:$true] %s1060
      %1066 = dma.vmem_to_hbm [thread:$0]  %s1061, 256, %s21, [#allocation4], 128, 128, 8
    $region129: #{tpu_custom_call.1} parent=1 // pred_fallthru
      _
    // Predicated region
    $region130: #{tpu_custom_call.1} parent=1 // pred_check
      _
    $region131: #{tpu_custom_call.1} parent=1 // pred_check_branch
      %1068 = sbr.rel (0) target = $region133
    $region132: #{tpu_custom_call.1} parent=1 // pred_region
      %1069 = dma.done [#allocation4], 256
    $region133: #{tpu_custom_call.1} parent=1 // pred_fallthru
      _
    %1070 = vsyncpa [#allocation3], 1
    %1071 = vsyncpa [#allocation6], 1
    %1072 = vsyncpa [#allocation9], 1
    %1073 = vsyncpa [#allocation12], 1
    %1074 = vsyncpa [#allocation15], 1
    %1075 = vsyncpa [#allocation18], 1
    %1076 = vsyncpa [#allocation4], 1

</llo_original>
